<compile_context>
chip_gen: v7x
topology: tpu7x:2x2x1
jax: 0.10.0
libtpu: 0.0.40
codegen_flags: <defaults>
</compile_context>

<pallas_src>
import math

import jax
import jax.numpy as jnp
from jax.experimental import pallas as pl
from jax.experimental.pallas import tpu as pltpu  # noqa: F401  (TPU backend module)

# ---- small, module-consistent shapes -----------------------------------------
B = 2          # batch
H = 4          # heads
S = 16         # sequence length
D_HEAD = 128   # head dim (lane-aligned)


# ==============================================================================
# Kernel: single grid step — the whole (B, H, S, d_head) problem fits trivially
# in VMEM at these shapes. Heads are processed together because the head-axis
# softmax couples them.
# ==============================================================================
def _make_sdpa_kernel(b, h, s, d):
    inv_scale = 1.0 / math.sqrt(d)

    def kernel(q_ref, k_ref, v_ref, o_ref):
        # Collapse (B, H) into one batch dim for the MXU matmuls (leading-dim
        # reshape only — no data movement on the (sublane, lane) tile).
        q = q_ref[...].reshape(b * h, s, d)
        k = k_ref[...].reshape(b * h, s, d)
        v = v_ref[...].reshape(b * h, s, d)

        # scores = q k^T / sqrt(d_head) — batched over (batch*head), contracting
        # on d_head (no explicit transpose of K is materialized).
        scores = jnp.einsum("nqd,nkd->nqk", q, k,
                            preferred_element_type=jnp.float32) * inv_scale
        scores = scores.reshape(b, h, s, s)

        # Softmax over the HEAD axis (PyTorch implicit-dim rule for 4-D input).
        m = jnp.max(scores, axis=1, keepdims=True)                 # (B,1,S,S)
        e = jnp.exp(scores - m)                                    # (B,H,S,S)
        p = e / jnp.sum(e, axis=1, keepdims=True)                  # exact divide

        # out = P v — batched over (batch*head).
        out = jnp.einsum("nqk,nkd->nqd",
                         p.reshape(b * h, s, s), v,
                         preferred_element_type=jnp.float32)       # (B*H,S,d)
        o_ref[...] = out.reshape(b, h, s, d).astype(o_ref.dtype)

    return kernel


# ==============================================================================
# pallas_call wrapper
# ==============================================================================
def scaled_dot_product_attn(q, k, v, mask=None):
    # TODO(synk): mask branch of the reference module is not implemented.
    assert mask is None, "mask path not implemented"
    b, h, s, d = q.shape

    full_spec = pl.BlockSpec((b, h, s, d), lambda: (0, 0, 0, 0))
    itemsize = jnp.dtype(q.dtype).itemsize
    flops = 2 * (2 * b * h * s * s * d) + 6 * b * h * s * s   # two matmuls + softmax
    bytes_accessed = 4 * b * h * s * d * itemsize             # q, k, v, out

    return pl.pallas_call(
        _make_sdpa_kernel(b, h, s, d),
        out_shape=jax.ShapeDtypeStruct((b, h, s, d), q.dtype),
        in_specs=[full_spec, full_spec, full_spec],
        out_specs=full_spec,
        cost_estimate=pl.CostEstimate(
            flops=flops,
            bytes_accessed=bytes_accessed,
            transcendentals=b * h * s * s),
    )(q, k, v)


# ==============================================================================
# Pure-JAX reference (mirrors the PyTorch forward exactly, mask=None path).
# HIGHEST precision keeps the reference in true f32 on real TPU hardware so it
# matches the f32 kernel numerics.
# ==============================================================================
def reference_sdpa(q, k, v):
    s = jnp.einsum("bhqd,bhkd->bhqk", q, k,
                   precision=jax.lax.Precision.HIGHEST) / math.sqrt(q.shape[-1])
    p = jax.nn.softmax(s, axis=1)          # implicit-dim softmax on 4-D => dim=1
    return jnp.einsum("bhqk,bhkd->bhqd", p, v,
                      precision=jax.lax.Precision.HIGHEST)


if __name__ == "__main__":
    key = jax.random.PRNGKey(0)
    kq, kk, kv = jax.random.split(key, 3)
    q = jax.random.normal(kq, (B, H, S, D_HEAD), dtype=jnp.float32)
    k = jax.random.normal(kk, (B, H, S, D_HEAD), dtype=jnp.float32)
    v = jax.random.normal(kv, (B, H, S, D_HEAD), dtype=jnp.float32)

    out = scaled_dot_product_attn(q, k, v)
    out = jax.block_until_ready(out)

    ref = reference_sdpa(q, k, v)
    assert out.shape == (B, H, S, D_HEAD)
    assert jnp.allclose(out, ref, rtol=2e-3, atol=2e-3), "mismatch vs JAX reference"

    print("KERNEL_OK")
</pallas_src>

<mosaic_0001>
module attributes {stable_mosaic.version = 11 : i64} {
  func.func @kernel(%arg0: memref<2x4x16x128xf32, #tpu.memory_space<vmem>>, %arg1: memref<2x4x16x128xf32, #tpu.memory_space<vmem>>, %arg2: memref<2x4x16x128xf32, #tpu.memory_space<vmem>>, %arg3: memref<2x4x16x128xf32, #tpu.memory_space<vmem>>) attributes {dimension_semantics = [], scalar_prefetch = 0 : i64, scratch_operands = 0 : i64, tpu.core_type = #tpu.core_type<tc>} {
    %c0 = arith.constant 0 : index
    %c0_0 = arith.constant 0 : index
    %c0_1 = arith.constant 0 : index
    %c0_2 = arith.constant 0 : index
    %0 = vector.load %arg0[%c0, %c0_0, %c0_1, %c0_2] : memref<2x4x16x128xf32, #tpu.memory_space<vmem>>, vector<2x4x16x128xf32>
    %1 = vector.shape_cast %0 : vector<2x4x16x128xf32> to vector<8x16x128xf32>
    %c0_3 = arith.constant 0 : index
    %c0_4 = arith.constant 0 : index
    %c0_5 = arith.constant 0 : index
    %c0_6 = arith.constant 0 : index
    %2 = vector.load %arg1[%c0_3, %c0_4, %c0_5, %c0_6] : memref<2x4x16x128xf32, #tpu.memory_space<vmem>>, vector<2x4x16x128xf32>
    %3 = vector.shape_cast %2 : vector<2x4x16x128xf32> to vector<8x16x128xf32>
    %c0_7 = arith.constant 0 : index
    %c0_8 = arith.constant 0 : index
    %c0_9 = arith.constant 0 : index
    %c0_10 = arith.constant 0 : index
    %4 = vector.load %arg2[%c0_7, %c0_8, %c0_9, %c0_10] : memref<2x4x16x128xf32, #tpu.memory_space<vmem>>, vector<2x4x16x128xf32>
    %5 = vector.shape_cast %4 : vector<2x4x16x128xf32> to vector<8x16x128xf32>
    "tpu.trace_start"() <{level = 10 : i32, message = "nqd,nkd->nqk"}> : () -> ()
    %cst = arith.constant dense<0.000000e+00> : vector<8x16x16xf32>
    %6 = tpu.matmul %1, %3, %cst {dimension_numbers = #tpu.dot_dimension_numbers<[2], [2], [1], [1], [0, 0, 0, 1, 1, 1], [0], [0]>} : vector<8x16x128xf32>, vector<8x16x128xf32>, vector<8x16x16xf32> -> vector<8x16x16xf32>
    "tpu.trace_stop"() : () -> ()
    %cst_11 = arith.constant 0.0883883461 : f32
    %7 = vector.broadcast %cst_11 : f32 to vector<8x16x16xf32>
    %8 = arith.mulf %6, %7 : vector<8x16x16xf32>
    %9 = vector.shape_cast %8 : vector<8x16x16xf32> to vector<2x4x16x16xf32>
    %cst_12 = arith.constant dense<0xFF800000> : vector<2x16x16xf32>
    %10 = vector.multi_reduction <maximumf>, %9, %cst_12 [1] : vector<2x4x16x16xf32> to vector<2x16x16xf32>
    %11 = vector.shape_cast %10 : vector<2x16x16xf32> to vector<2x1x16x16xf32>
    %12 = vector.broadcast %11 : vector<2x1x16x16xf32> to vector<2x4x16x16xf32>
    %13 = arith.subf %9, %12 : vector<2x4x16x16xf32>
    %14 = math.exp %13 : vector<2x4x16x16xf32>
    %cst_13 = arith.constant dense<0.000000e+00> : vector<2x16x16xf32>
    %15 = vector.multi_reduction <add>, %14, %cst_13 [1] : vector<2x4x16x16xf32> to vector<2x16x16xf32>
    %16 = vector.shape_cast %15 : vector<2x16x16xf32> to vector<2x1x16x16xf32>
    %17 = vector.broadcast %16 : vector<2x1x16x16xf32> to vector<2x4x16x16xf32>
    %18 = arith.divf %14, %17 : vector<2x4x16x16xf32>
    %19 = vector.shape_cast %18 : vector<2x4x16x16xf32> to vector<8x16x16xf32>
    "tpu.trace_start"() <{level = 10 : i32, message = "nqk,nkd->nqd"}> : () -> ()
    %cst_14 = arith.constant dense<0.000000e+00> : vector<8x16x128xf32>
    %20 = tpu.matmul %19, %5, %cst_14 {dimension_numbers = #tpu.dot_dimension_numbers<[2], [1], [1], [2], [0, 0, 0, 1, 1, 2], [0], [0]>} : vector<8x16x16xf32>, vector<8x16x128xf32>, vector<8x16x128xf32> -> vector<8x16x128xf32>
    "tpu.trace_stop"() : () -> ()
    %21 = vector.shape_cast %20 : vector<8x16x128xf32> to vector<2x4x16x128xf32>
    %c0_15 = arith.constant 0 : index
    %c0_16 = arith.constant 0 : index
    %c0_17 = arith.constant 0 : index
    %c0_18 = arith.constant 0 : index
    %22 = vector.load %arg3[%c0_15, %c0_16, %c0_17, %c0_18] : memref<2x4x16x128xf32, #tpu.memory_space<vmem>>, vector<2x4x16x128xf32>
    tpu.vector_store %arg3[%c0_15, %c0_16, %c0_17, %c0_18], %21 {strides = array<i32>} : memref<2x4x16x128xf32, #tpu.memory_space<vmem>>, vector<2x4x16x128xf32>,
    return
  }
}

</mosaic_0001>

<llo_original>
// kernel: tpu_custom_call.1
$region0: #{tpu_custom_call.1}
  #allocation0 [shape = 'u32[]', space=smem, size = 0x4, offset = 0x4, fixed_abs, tag = 'smem constant byte address 0x4 - core index']
  #allocation1 [shape = 'u32[144,128]{1,0:T(1,128)}', space=vmem, size = 0x12000, scoped, tag = 'internal scratch']
  %s0 = inlined_call_operand.hbm [shape: f32[2,4,16,128], index: 0, kind: input, shape index: {}]
  %s1 = inlined_call_operand.hbm [shape: f32[2,4,16,128], index: 1, kind: input, shape index: {}]
  %s2 = inlined_call_operand.hbm [shape: f32[2,4,16,128], index: 2, kind: input, shape index: {}]
  %s3 = inlined_call_operand.hbm [shape: f32[2,4,16,128], index: 3, kind: output, shape index: {}]
  %s4 = sld [smem:[#allocation0]]
  $region34: #{tpu_custom_call.1} parent=0
    _
  %s6 = ssub.s32 1, %s4
  %s7 = scalar_select 0, %s6, %s4
  $region1: #{tpu_custom_call.1} parent=0
    #allocation2 [shape = 'u8[65536]{0}', space=vmem, size = 0x10000, scoped, tag = 'input window, operand 0, single buffered']
    #allocation3 [shape = 's32[1]{0}', space=sflag, size = 0x4, scoped, tag = 'scoped memory for tpu_custom_call.1']
    #allocation4 [shape = 's32[1]{0}', space=sflag, size = 0x4, scoped, tag = 'scoped memory for tpu_custom_call.1']
    #allocation5 [shape = 'u8[65536]{0}', space=vmem, size = 0x10000, scoped, tag = 'input window, operand 1, single buffered']
    #allocation6 [shape = 's32[1]{0}', space=sflag, size = 0x4, scoped, tag = 'scoped memory for tpu_custom_call.1']
    #allocation7 [shape = 'u8[65536]{0}', space=vmem, size = 0x10000, scoped, tag = 'input window, operand 2, single buffered']
    #allocation8 [shape = 'u8[65536]{0}', space=vmem, size = 0x10000, scoped, tag = 'output window, operand 0, single buffered']
    %8 = vsyncpa [#allocation3], 0
    %9 = vsyncpa [#allocation6], 0
    %10 = vsyncpa [#allocation4], 0
    // Predicated region
    $region2: #{tpu_custom_call.1} parent=1 // pred_check
      _
    $region3: #{tpu_custom_call.1} parent=1 // pred_check_branch
      %12 = sbr.rel (0) target = $region5
    $region4: #{tpu_custom_call.1} parent=1 // pred_region
      %s14 = ssub.s32 2048, 2048
      %15 = vsyncadd [#allocation3], %s14
      %s16 = sshll.u32 [#allocation2], 4
      %s17 = int_to_ptr.vmem [resolvable:$true] %s16
      %22 = dma.hbm_to_vmem [thread:$0]  %s0, 2048, %s17, [#allocation3], 128, 128, 8
    $region5: #{tpu_custom_call.1} parent=1 // pred_fallthru
      _
    // Predicated region
    $region6: #{tpu_custom_call.1} parent=1 // pred_check
      _
    $region7: #{tpu_custom_call.1} parent=1 // pred_check_branch
      %24 = sbr.rel (0) target = $region9
    $region8: #{tpu_custom_call.1} parent=1 // pred_region
      %s26 = ssub.s32 2048, 2048
      %27 = vsyncadd [#allocation6], %s26
      %s28 = sshll.u32 [#allocation5], 4
      %s29 = int_to_ptr.vmem [resolvable:$true] %s28
      %34 = dma.hbm_to_vmem [thread:$0]  %s1, 2048, %s29, [#allocation6], 128, 128, 8
    $region9: #{tpu_custom_call.1} parent=1 // pred_fallthru
      _
    // Predicated region
    $region10: #{tpu_custom_call.1} parent=1 // pred_check
      _
    $region11: #{tpu_custom_call.1} parent=1 // pred_check_branch
      %36 = sbr.rel (0) target = $region13
    $region12: #{tpu_custom_call.1} parent=1 // pred_region
      %s38 = ssub.s32 2048, 2048
      %39 = vsyncadd [#allocation6], %s38
      %s40 = sshll.u32 [#allocation7], 4
      %s41 = int_to_ptr.vmem [resolvable:$true] %s40
      %46 = dma.hbm_to_vmem [thread:$0]  %s2, 2048, %s41, [#allocation6], 128, 128, 8
    $region13: #{tpu_custom_call.1} parent=1 // pred_fallthru
      _
    // Predicated region
    $region14: #{tpu_custom_call.1} parent=1 // pred_check
      _
    $region15: #{tpu_custom_call.1} parent=1 // pred_check_branch
      %48 = sbr.rel (0) target = $region17
    $region16: #{tpu_custom_call.1} parent=1 // pred_region
      %49 = dma.done [#allocation3], 2048
    $region17: #{tpu_custom_call.1} parent=1 // pred_fallthru
      _
    // Predicated region
    $region18: #{tpu_custom_call.1} parent=1 // pred_check
      _
    $region19: #{tpu_custom_call.1} parent=1 // pred_check_branch
      %51 = sbr.rel (0) target = $region21
    $region20: #{tpu_custom_call.1} parent=1 // pred_region
      %52 = dma.done [#allocation6], 2048
    $region21: #{tpu_custom_call.1} parent=1 // pred_fallthru
      _
    // Predicated region
    $region22: #{tpu_custom_call.1} parent=1 // pred_check
      _
    $region23: #{tpu_custom_call.1} parent=1 // pred_check_branch
      %54 = sbr.rel (0) target = $region25
    $region24: #{tpu_custom_call.1} parent=1 // pred_region
      %55 = dma.done [#allocation6], 2048
    $region25: #{tpu_custom_call.1} parent=1 // pred_fallthru
      _
    %v56 = vld [vmem:[#allocation2] sm:$0xff]
    %v57 = vld [vmem:[#allocation2 + $0x8] sm:$0xff]
    %v58 = vld [vmem:[#allocation2 + $0x10] sm:$0xff]
    %v59 = vld [vmem:[#allocation2 + $0x18] sm:$0xff]
    %v60 = vld [vmem:[#allocation2 + $0x20] sm:$0xff]
    %v61 = vld [vmem:[#allocation2 + $0x28] sm:$0xff]
    %v62 = vld [vmem:[#allocation2 + $0x30] sm:$0xff]
    %v63 = vld [vmem:[#allocation2 + $0x38] sm:$0xff]
    %v64 = vld [vmem:[#allocation2 + $0x40] sm:$0xff]
    %v65 = vld [vmem:[#allocation2 + $0x48] sm:$0xff]
    %v66 = vld [vmem:[#allocation2 + $0x50] sm:$0xff]
    %v67 = vld [vmem:[#allocation2 + $0x58] sm:$0xff]
    %v68 = vld [vmem:[#allocation2 + $0x60] sm:$0xff]
    %v69 = vld [vmem:[#allocation2 + $0x68] sm:$0xff]
    %v70 = vld [vmem:[#allocation2 + $0x70] sm:$0xff]
    %v71 = vld [vmem:[#allocation2 + $0x78] sm:$0xff]
    %v72 = vld [vmem:[#allocation5] sm:$0xff]
    %v73 = vld [vmem:[#allocation5 + $0x8] sm:$0xff]
    %v74 = vld [vmem:[#allocation5 + $0x10] sm:$0xff]
    %v75 = vld [vmem:[#allocation5 + $0x18] sm:$0xff]
    %v76 = vld [vmem:[#allocation5 + $0x20] sm:$0xff]
    %v77 = vld [vmem:[#allocation5 + $0x28] sm:$0xff]
    %v78 = vld [vmem:[#allocation5 + $0x30] sm:$0xff]
    %v79 = vld [vmem:[#allocation5 + $0x38] sm:$0xff]
    %v80 = vld [vmem:[#allocation5 + $0x40] sm:$0xff]
    %v81 = vld [vmem:[#allocation5 + $0x48] sm:$0xff]
    %v82 = vld [vmem:[#allocation5 + $0x50] sm:$0xff]
    %v83 = vld [vmem:[#allocation5 + $0x58] sm:$0xff]
    %v84 = vld [vmem:[#allocation5 + $0x60] sm:$0xff]
    %v85 = vld [vmem:[#allocation5 + $0x68] sm:$0xff]
    %v86 = vld [vmem:[#allocation5 + $0x70] sm:$0xff]
    %v87 = vld [vmem:[#allocation5 + $0x78] sm:$0xff]
    %v88 = vld [vmem:[#allocation7] sm:$0xff]
    %v89 = vld [vmem:[#allocation7 + $0x8] sm:$0xff]
    %v90 = vld [vmem:[#allocation7 + $0x10] sm:$0xff]
    %v91 = vld [vmem:[#allocation7 + $0x18] sm:$0xff]
    %v92 = vld [vmem:[#allocation7 + $0x20] sm:$0xff]
    %v93 = vld [vmem:[#allocation7 + $0x28] sm:$0xff]
    %v94 = vld [vmem:[#allocation7 + $0x30] sm:$0xff]
    %v95 = vld [vmem:[#allocation7 + $0x38] sm:$0xff]
    %v96 = vld [vmem:[#allocation7 + $0x40] sm:$0xff]
    %v97 = vld [vmem:[#allocation7 + $0x48] sm:$0xff]
    %v98 = vld [vmem:[#allocation7 + $0x50] sm:$0xff]
    %v99 = vld [vmem:[#allocation7 + $0x58] sm:$0xff]
    %v100 = vld [vmem:[#allocation7 + $0x60] sm:$0xff]
    %v101 = vld [vmem:[#allocation7 + $0x68] sm:$0xff]
    %v102 = vld [vmem:[#allocation7 + $0x70] sm:$0xff]
    %v103 = vld [vmem:[#allocation7 + $0x78] sm:$0xff]
    %104 = vmatprep.subr.mxu0 0.0
    %105 = vmatpush1.xpose.msra.mxu0 %v72
    %106 = vmatprep.subr.mxu0 0.0
    %107 = vmatpush1.xpose.msra.mxu0 %v73
    %108 = vmatprep.subr.mxu0 0.0
    %109 = vmatpush1.xpose.msra.mxu0 0.0
    %110 = vmatprep.subr.mxu0 0.0
    %111 = vmatpush1.xpose.msra.mxu0 0.0
    %112 = vmatprep.subr.mxu0 0.0
    %113 = vmatpush1.xpose.msra.mxu0 0.0
    %114 = vmatprep.subr.mxu0 0.0
    %115 = vmatpush1.xpose.msra.mxu0 0.0
    %116 = vmatprep.subr.mxu0 0.0
    %117 = vmatpush1.xpose.msra.mxu0 0.0
    %118 = vmatprep.subr.mxu0 0.0
    %119 = vmatpush1.xpose.msra.mxu0 0.0
    %120 = vmatprep.subr.mxu0 0.0
    %121 = vmatpush1.xpose.msra.mxu0 0.0
    %122 = vmatprep.subr.mxu0 0.0
    %123 = vmatpush1.xpose.msra.mxu0 0.0
    %124 = vmatprep.subr.mxu0 0.0
    %125 = vmatpush1.xpose.msra.mxu0 0.0
    %126 = vmatprep.subr.mxu0 0.0
    %127 = vmatpush1.xpose.msra.mxu0 0.0
    %128 = vmatprep.subr.mxu0 0.0
    %129 = vmatpush1.xpose.msra.mxu0 0.0
    %130 = vmatprep.subr.mxu0 0.0
    %131 = vmatpush1.xpose.msra.mxu0 0.0
    %132 = vmatprep.subr.mxu0 0.0
    %133 = vmatpush1.xpose.msra.mxu0 0.0
    %134 = vmatprep.subr.mxu0 0.0
    %135 = vmatpush1.xpose.msra.mxu0 0.0
    %136 = vmatprep.subr.mxu0 0.0
    %137 = vmatpush1.xpose.msra.mxu0 0.0
    %138 = vmatprep.subr.mxu0 0.0
    %139 = vmatpush1.xpose.msra.mxu0 0.0
    %140 = vmatprep.subr.mxu0 0.0
    %141 = vmatpush1.xpose.msra.mxu0 0.0
    %142 = vmatprep.subr.mxu0 0.0
    %143 = vmatpush1.xpose.msra.mxu0 0.0
    %144 = vmatprep.subr.mxu0 0.0
    %145 = vmatpush1.xpose.msra.mxu0 0.0
    %146 = vmatprep.subr.mxu0 0.0
    %147 = vmatpush1.xpose.msra.mxu0 0.0
    %148 = vmatprep.subr.mxu0 0.0
    %149 = vmatpush1.xpose.msra.mxu0 0.0
    %150 = vmatprep.subr.mxu0 0.0
    %151 = vmatpush1.xpose.msra.mxu0 0.0
    %152 = vmatprep.subr.mxu0 0.0
    %153 = vmatpush1.xpose.msra.mxu0 0.0
    %154 = vmatprep.subr.mxu0 0.0
    %155 = vmatpush1.xpose.msra.mxu0 0.0
    %156 = vmatprep.subr.mxu0 0.0
    %157 = vmatpush1.xpose.msra.mxu0 0.0
    %158 = vmatprep.subr.mxu0 0.0
    %159 = vmatpush1.xpose.msra.mxu0 0.0
    %160 = vmatprep.subr.mxu0 0.0
    %161 = vmatpush1.xpose.msra.mxu0 0.0
    %162 = vmatprep.subr.mxu0 0.0
    %163 = vmatpush1.xpose.msra.mxu0 0.0
    %164 = vmatprep.subr.mxu0 0.0
    %165 = vmatpush1.xpose.msra.mxu0 0.0
    %166 = vmatprep.subr.mxu0 0.0
    %167 = vmatpush1.xpose.msra.mxu0 0.0
    %168 = vmatprep.mubr.f32.mxu0 0.0
    %169 = vmatmul.mubr.f32.gmra.mrb[0].mxu0 %v56
    %v170 = vpop.f32.mrb[0].mxu0
    %v171 = vadd.f32 0.0, %v170
    %v172 = vpop.f32.mrb[0].mxu0
    %173 = vmatprep.mubr.f32.mxu0 0.0
    %174 = vmatmul.mubr.f32.gmra.mrb[0].mxu0 %v57
    %v175 = vpop.f32.mrb[0].mxu0
    %v176 = vadd.f32 0.0, %v175
    %v177 = vpop.f32.mrb[0].mxu0
    %178 = vdwg.mxu0
    %179 = vmatprep.subr.mxu0 0.0
    %180 = vmatpush1.xpose.msra.mxu0 %v74
    %181 = vmatprep.subr.mxu0 0.0
    %182 = vmatpush1.xpose.msra.mxu0 %v75
    %183 = vmatprep.subr.mxu0 0.0
    %184 = vmatpush1.xpose.msra.mxu0 0.0
    %185 = vmatprep.subr.mxu0 0.0
    %186 = vmatpush1.xpose.msra.mxu0 0.0
    %187 = vmatprep.subr.mxu0 0.0
    %188 = vmatpush1.xpose.msra.mxu0 0.0
    %189 = vmatprep.subr.mxu0 0.0
    %190 = vmatpush1.xpose.msra.mxu0 0.0
    %191 = vmatprep.subr.mxu0 0.0
    %192 = vmatpush1.xpose.msra.mxu0 0.0
    %193 = vmatprep.subr.mxu0 0.0
    %194 = vmatpush1.xpose.msra.mxu0 0.0
    %195 = vmatprep.subr.mxu0 0.0
    %196 = vmatpush1.xpose.msra.mxu0 0.0
    %197 = vmatprep.subr.mxu0 0.0
    %198 = vmatpush1.xpose.msra.mxu0 0.0
    %199 = vmatprep.subr.mxu0 0.0
    %200 = vmatpush1.xpose.msra.mxu0 0.0
    %201 = vmatprep.subr.mxu0 0.0
    %202 = vmatpush1.xpose.msra.mxu0 0.0
    %203 = vmatprep.subr.mxu0 0.0
    %204 = vmatpush1.xpose.msra.mxu0 0.0
    %205 = vmatprep.subr.mxu0 0.0
    %206 = vmatpush1.xpose.msra.mxu0 0.0
    %207 = vmatprep.subr.mxu0 0.0
    %208 = vmatpush1.xpose.msra.mxu0 0.0
    %209 = vmatprep.subr.mxu0 0.0
    %210 = vmatpush1.xpose.msra.mxu0 0.0
    %211 = vmatprep.subr.mxu0 0.0
    %212 = vmatpush1.xpose.msra.mxu0 0.0
    %213 = vmatprep.subr.mxu0 0.0
    %214 = vmatpush1.xpose.msra.mxu0 0.0
    %215 = vmatprep.subr.mxu0 0.0
    %216 = vmatpush1.xpose.msra.mxu0 0.0
    %217 = vmatprep.subr.mxu0 0.0
    %218 = vmatpush1.xpose.msra.mxu0 0.0
    %219 = vmatprep.subr.mxu0 0.0
    %220 = vmatpush1.xpose.msra.mxu0 0.0
    %221 = vmatprep.subr.mxu0 0.0
    %222 = vmatpush1.xpose.msra.mxu0 0.0
    %223 = vmatprep.subr.mxu0 0.0
    %224 = vmatpush1.xpose.msra.mxu0 0.0
    %225 = vmatprep.subr.mxu0 0.0
    %226 = vmatpush1.xpose.msra.mxu0 0.0
    %227 = vmatprep.subr.mxu0 0.0
    %228 = vmatpush1.xpose.msra.mxu0 0.0
    %229 = vmatprep.subr.mxu0 0.0
    %230 = vmatpush1.xpose.msra.mxu0 0.0
    %231 = vmatprep.subr.mxu0 0.0
    %232 = vmatpush1.xpose.msra.mxu0 0.0
    %233 = vmatprep.subr.mxu0 0.0
    %234 = vmatpush1.xpose.msra.mxu0 0.0
    %235 = vmatprep.subr.mxu0 0.0
    %236 = vmatpush1.xpose.msra.mxu0 0.0
    %237 = vmatprep.subr.mxu0 0.0
    %238 = vmatpush1.xpose.msra.mxu0 0.0
    %239 = vmatprep.subr.mxu0 0.0
    %240 = vmatpush1.xpose.msra.mxu0 0.0
    %241 = vmatprep.subr.mxu0 0.0
    %242 = vmatpush1.xpose.msra.mxu0 0.0
    %243 = vmatprep.mubr.f32.mxu0 0.0
    %244 = vmatmul.mubr.f32.gmra.mrb[0].mxu0 %v58
    %v245 = vpop.f32.mrb[0].mxu0
    %v246 = vadd.f32 0.0, %v245
    %v247 = vpop.f32.mrb[0].mxu0
    %248 = vmatprep.mubr.f32.mxu0 0.0
    %249 = vmatmul.mubr.f32.gmra.mrb[0].mxu0 %v59
    %v250 = vpop.f32.mrb[0].mxu0
    %v251 = vadd.f32 0.0, %v250
    %v252 = vpop.f32.mrb[0].mxu0
    %253 = vdwg.mxu0
    %254 = vmatprep.subr.mxu0 0.0
    %255 = vmatpush1.xpose.msra.mxu0 %v76
    %256 = vmatprep.subr.mxu0 0.0
    %257 = vmatpush1.xpose.msra.mxu0 %v77
    %258 = vmatprep.subr.mxu0 0.0
    %259 = vmatpush1.xpose.msra.mxu0 0.0
    %260 = vmatprep.subr.mxu0 0.0
    %261 = vmatpush1.xpose.msra.mxu0 0.0
    %262 = vmatprep.subr.mxu0 0.0
    %263 = vmatpush1.xpose.msra.mxu0 0.0
    %264 = vmatprep.subr.mxu0 0.0
    %265 = vmatpush1.xpose.msra.mxu0 0.0
    %266 = vmatprep.subr.mxu0 0.0
    %267 = vmatpush1.xpose.msra.mxu0 0.0
    %268 = vmatprep.subr.mxu0 0.0
    %269 = vmatpush1.xpose.msra.mxu0 0.0
    %270 = vmatprep.subr.mxu0 0.0
    %271 = vmatpush1.xpose.msra.mxu0 0.0
    %272 = vmatprep.subr.mxu0 0.0
    %273 = vmatpush1.xpose.msra.mxu0 0.0
    %274 = vmatprep.subr.mxu0 0.0
    %275 = vmatpush1.xpose.msra.mxu0 0.0
    %276 = vmatprep.subr.mxu0 0.0
    %277 = vmatpush1.xpose.msra.mxu0 0.0
    %278 = vmatprep.subr.mxu0 0.0
    %279 = vmatpush1.xpose.msra.mxu0 0.0
    %280 = vmatprep.subr.mxu0 0.0
    %281 = vmatpush1.xpose.msra.mxu0 0.0
    %282 = vmatprep.subr.mxu0 0.0
    %283 = vmatpush1.xpose.msra.mxu0 0.0
    %284 = vmatprep.subr.mxu0 0.0
    %285 = vmatpush1.xpose.msra.mxu0 0.0
    %286 = vmatprep.subr.mxu0 0.0
    %287 = vmatpush1.xpose.msra.mxu0 0.0
    %288 = vmatprep.subr.mxu0 0.0
    %289 = vmatpush1.xpose.msra.mxu0 0.0
    %290 = vmatprep.subr.mxu0 0.0
    %291 = vmatpush1.xpose.msra.mxu0 0.0
    %292 = vmatprep.subr.mxu0 0.0
    %293 = vmatpush1.xpose.msra.mxu0 0.0
    %294 = vmatprep.subr.mxu0 0.0
    %295 = vmatpush1.xpose.msra.mxu0 0.0
    %296 = vmatprep.subr.mxu0 0.0
    %297 = vmatpush1.xpose.msra.mxu0 0.0
    %298 = vmatprep.subr.mxu0 0.0
    %299 = vmatpush1.xpose.msra.mxu0 0.0
    %300 = vmatprep.subr.mxu0 0.0
    %301 = vmatpush1.xpose.msra.mxu0 0.0
    %302 = vmatprep.subr.mxu0 0.0
    %303 = vmatpush1.xpose.msra.mxu0 0.0
    %304 = vmatprep.subr.mxu0 0.0
    %305 = vmatpush1.xpose.msra.mxu0 0.0
    %306 = vmatprep.subr.mxu0 0.0
    %307 = vmatpush1.xpose.msra.mxu0 0.0
    %308 = vmatprep.subr.mxu0 0.0
    %309 = vmatpush1.xpose.msra.mxu0 0.0
    %310 = vmatprep.subr.mxu0 0.0
    %311 = vmatpush1.xpose.msra.mxu0 0.0
    %312 = vmatprep.subr.mxu0 0.0
    %313 = vmatpush1.xpose.msra.mxu0 0.0
    %314 = vmatprep.subr.mxu0 0.0
    %315 = vmatpush1.xpose.msra.mxu0 0.0
    %316 = vmatprep.subr.mxu0 0.0
    %317 = vmatpush1.xpose.msra.mxu0 0.0
    %318 = vmatprep.mubr.f32.mxu0 0.0
    %319 = vmatmul.mubr.f32.gmra.mrb[0].mxu0 %v60
    %v320 = vpop.f32.mrb[0].mxu0
    %v321 = vadd.f32 0.0, %v320
    %v322 = vpop.f32.mrb[0].mxu0
    %323 = vmatprep.mubr.f32.mxu0 0.0
    %324 = vmatmul.mubr.f32.gmra.mrb[0].mxu0 %v61
    %v325 = vpop.f32.mrb[0].mxu0
    %v326 = vadd.f32 0.0, %v325
    %v327 = vpop.f32.mrb[0].mxu0
    %328 = vdwg.mxu0
    %329 = vmatprep.subr.mxu0 0.0
    %330 = vmatpush1.xpose.msra.mxu0 %v78
    %331 = vmatprep.subr.mxu0 0.0
    %332 = vmatpush1.xpose.msra.mxu0 %v79
    %333 = vmatprep.subr.mxu0 0.0
    %334 = vmatpush1.xpose.msra.mxu0 0.0
    %335 = vmatprep.subr.mxu0 0.0
    %336 = vmatpush1.xpose.msra.mxu0 0.0
    %337 = vmatprep.subr.mxu0 0.0
    %338 = vmatpush1.xpose.msra.mxu0 0.0
    %339 = vmatprep.subr.mxu0 0.0
    %340 = vmatpush1.xpose.msra.mxu0 0.0
    %341 = vmatprep.subr.mxu0 0.0
    %342 = vmatpush1.xpose.msra.mxu0 0.0
    %343 = vmatprep.subr.mxu0 0.0
    %344 = vmatpush1.xpose.msra.mxu0 0.0
    %345 = vmatprep.subr.mxu0 0.0
    %346 = vmatpush1.xpose.msra.mxu0 0.0
    %347 = vmatprep.subr.mxu0 0.0
    %348 = vmatpush1.xpose.msra.mxu0 0.0
    %349 = vmatprep.subr.mxu0 0.0
    %350 = vmatpush1.xpose.msra.mxu0 0.0
    %351 = vmatprep.subr.mxu0 0.0
    %352 = vmatpush1.xpose.msra.mxu0 0.0
    %353 = vmatprep.subr.mxu0 0.0
    %354 = vmatpush1.xpose.msra.mxu0 0.0
    %355 = vmatprep.subr.mxu0 0.0
    %356 = vmatpush1.xpose.msra.mxu0 0.0
    %357 = vmatprep.subr.mxu0 0.0
    %358 = vmatpush1.xpose.msra.mxu0 0.0
    %359 = vmatprep.subr.mxu0 0.0
    %360 = vmatpush1.xpose.msra.mxu0 0.0
    %361 = vmatprep.subr.mxu0 0.0
    %362 = vmatpush1.xpose.msra.mxu0 0.0
    %363 = vmatprep.subr.mxu0 0.0
    %364 = vmatpush1.xpose.msra.mxu0 0.0
    %365 = vmatprep.subr.mxu0 0.0
    %366 = vmatpush1.xpose.msra.mxu0 0.0
    %367 = vmatprep.subr.mxu0 0.0
    %368 = vmatpush1.xpose.msra.mxu0 0.0
    %369 = vmatprep.subr.mxu0 0.0
    %370 = vmatpush1.xpose.msra.mxu0 0.0
    %371 = vmatprep.subr.mxu0 0.0
    %372 = vmatpush1.xpose.msra.mxu0 0.0
    %373 = vmatprep.subr.mxu0 0.0
    %374 = vmatpush1.xpose.msra.mxu0 0.0
    %375 = vmatprep.subr.mxu0 0.0
    %376 = vmatpush1.xpose.msra.mxu0 0.0
    %377 = vmatprep.subr.mxu0 0.0
    %378 = vmatpush1.xpose.msra.mxu0 0.0
    %379 = vmatprep.subr.mxu0 0.0
    %380 = vmatpush1.xpose.msra.mxu0 0.0
    %381 = vmatprep.subr.mxu0 0.0
    %382 = vmatpush1.xpose.msra.mxu0 0.0
    %383 = vmatprep.subr.mxu0 0.0
    %384 = vmatpush1.xpose.msra.mxu0 0.0
    %385 = vmatprep.subr.mxu0 0.0
    %386 = vmatpush1.xpose.msra.mxu0 0.0
    %387 = vmatprep.subr.mxu0 0.0
    %388 = vmatpush1.xpose.msra.mxu0 0.0
    %389 = vmatprep.subr.mxu0 0.0
    %390 = vmatpush1.xpose.msra.mxu0 0.0
    %391 = vmatprep.subr.mxu0 0.0
    %392 = vmatpush1.xpose.msra.mxu0 0.0
    %393 = vmatprep.mubr.f32.mxu0 0.0
    %394 = vmatmul.mubr.f32.gmra.mrb[0].mxu0 %v62
    %v395 = vpop.f32.mrb[0].mxu0
    %v396 = vadd.f32 0.0, %v395
    %v397 = vpop.f32.mrb[0].mxu0
    %398 = vmatprep.mubr.f32.mxu0 0.0
    %399 = vmatmul.mubr.f32.gmra.mrb[0].mxu0 %v63
    %v400 = vpop.f32.mrb[0].mxu0
    %v401 = vadd.f32 0.0, %v400
    %v402 = vpop.f32.mrb[0].mxu0
    %403 = vdwg.mxu0
    %404 = vmatprep.subr.mxu0 0.0
    %405 = vmatpush1.xpose.msra.mxu0 %v80
    %406 = vmatprep.subr.mxu0 0.0
    %407 = vmatpush1.xpose.msra.mxu0 %v81
    %408 = vmatprep.subr.mxu0 0.0
    %409 = vmatpush1.xpose.msra.mxu0 0.0
    %410 = vmatprep.subr.mxu0 0.0
    %411 = vmatpush1.xpose.msra.mxu0 0.0
    %412 = vmatprep.subr.mxu0 0.0
    %413 = vmatpush1.xpose.msra.mxu0 0.0
    %414 = vmatprep.subr.mxu0 0.0
    %415 = vmatpush1.xpose.msra.mxu0 0.0
    %416 = vmatprep.subr.mxu0 0.0
    %417 = vmatpush1.xpose.msra.mxu0 0.0
    %418 = vmatprep.subr.mxu0 0.0
    %419 = vmatpush1.xpose.msra.mxu0 0.0
    %420 = vmatprep.subr.mxu0 0.0
    %421 = vmatpush1.xpose.msra.mxu0 0.0
    %422 = vmatprep.subr.mxu0 0.0
    %423 = vmatpush1.xpose.msra.mxu0 0.0
    %424 = vmatprep.subr.mxu0 0.0
    %425 = vmatpush1.xpose.msra.mxu0 0.0
    %426 = vmatprep.subr.mxu0 0.0
    %427 = vmatpush1.xpose.msra.mxu0 0.0
    %428 = vmatprep.subr.mxu0 0.0
    %429 = vmatpush1.xpose.msra.mxu0 0.0
    %430 = vmatprep.subr.mxu0 0.0
    %431 = vmatpush1.xpose.msra.mxu0 0.0
    %432 = vmatprep.subr.mxu0 0.0
    %433 = vmatpush1.xpose.msra.mxu0 0.0
    %434 = vmatprep.subr.mxu0 0.0
    %435 = vmatpush1.xpose.msra.mxu0 0.0
    %436 = vmatprep.subr.mxu0 0.0
    %437 = vmatpush1.xpose.msra.mxu0 0.0
    %438 = vmatprep.subr.mxu0 0.0
    %439 = vmatpush1.xpose.msra.mxu0 0.0
    %440 = vmatprep.subr.mxu0 0.0
    %441 = vmatpush1.xpose.msra.mxu0 0.0
    %442 = vmatprep.subr.mxu0 0.0
    %443 = vmatpush1.xpose.msra.mxu0 0.0
    %444 = vmatprep.subr.mxu0 0.0
    %445 = vmatpush1.xpose.msra.mxu0 0.0
    %446 = vmatprep.subr.mxu0 0.0
    %447 = vmatpush1.xpose.msra.mxu0 0.0
    %448 = vmatprep.subr.mxu0 0.0
    %449 = vmatpush1.xpose.msra.mxu0 0.0
    %450 = vmatprep.subr.mxu0 0.0
    %451 = vmatpush1.xpose.msra.mxu0 0.0
    %452 = vmatprep.subr.mxu0 0.0
    %453 = vmatpush1.xpose.msra.mxu0 0.0
    %454 = vmatprep.subr.mxu0 0.0
    %455 = vmatpush1.xpose.msra.mxu0 0.0
    %456 = vmatprep.subr.mxu0 0.0
    %457 = vmatpush1.xpose.msra.mxu0 0.0
    %458 = vmatprep.subr.mxu0 0.0
    %459 = vmatpush1.xpose.msra.mxu0 0.0
    %460 = vmatprep.subr.mxu0 0.0
    %461 = vmatpush1.xpose.msra.mxu0 0.0
    %462 = vmatprep.subr.mxu0 0.0
    %463 = vmatpush1.xpose.msra.mxu0 0.0
    %464 = vmatprep.subr.mxu0 0.0
    %465 = vmatpush1.xpose.msra.mxu0 0.0
    %466 = vmatprep.subr.mxu0 0.0
    %467 = vmatpush1.xpose.msra.mxu0 0.0
    %468 = vmatprep.mubr.f32.mxu0 0.0
    %469 = vmatmul.mubr.f32.gmra.mrb[0].mxu0 %v64
    %v470 = vpop.f32.mrb[0].mxu0
    %v471 = vadd.f32 0.0, %v470
    %v472 = vpop.f32.mrb[0].mxu0
    %473 = vmatprep.mubr.f32.mxu0 0.0
    %474 = vmatmul.mubr.f32.gmra.mrb[0].mxu0 %v65
    %v475 = vpop.f32.mrb[0].mxu0
    %v476 = vadd.f32 0.0, %v475
    %v477 = vpop.f32.mrb[0].mxu0
    %478 = vdwg.mxu0
    %479 = vmatprep.subr.mxu0 0.0
    %480 = vmatpush1.xpose.msra.mxu0 %v82
    %481 = vmatprep.subr.mxu0 0.0
    %482 = vmatpush1.xpose.msra.mxu0 %v83
    %483 = vmatprep.subr.mxu0 0.0
    %484 = vmatpush1.xpose.msra.mxu0 0.0
    %485 = vmatprep.subr.mxu0 0.0
    %486 = vmatpush1.xpose.msra.mxu0 0.0
    %487 = vmatprep.subr.mxu0 0.0
    %488 = vmatpush1.xpose.msra.mxu0 0.0
    %489 = vmatprep.subr.mxu0 0.0
    %490 = vmatpush1.xpose.msra.mxu0 0.0
    %491 = vmatprep.subr.mxu0 0.0
    %492 = vmatpush1.xpose.msra.mxu0 0.0
    %493 = vmatprep.subr.mxu0 0.0
    %494 = vmatpush1.xpose.msra.mxu0 0.0
    %495 = vmatprep.subr.mxu0 0.0
    %496 = vmatpush1.xpose.msra.mxu0 0.0
    %497 = vmatprep.subr.mxu0 0.0
    %498 = vmatpush1.xpose.msra.mxu0 0.0
    %499 = vmatprep.subr.mxu0 0.0
    %500 = vmatpush1.xpose.msra.mxu0 0.0
    %501 = vmatprep.subr.mxu0 0.0
    %502 = vmatpush1.xpose.msra.mxu0 0.0
    %503 = vmatprep.subr.mxu0 0.0
    %504 = vmatpush1.xpose.msra.mxu0 0.0
    %505 = vmatprep.subr.mxu0 0.0
    %506 = vmatpush1.xpose.msra.mxu0 0.0
    %507 = vmatprep.subr.mxu0 0.0
    %508 = vmatpush1.xpose.msra.mxu0 0.0
    %509 = vmatprep.subr.mxu0 0.0
    %510 = vmatpush1.xpose.msra.mxu0 0.0
    %511 = vmatprep.subr.mxu0 0.0
    %512 = vmatpush1.xpose.msra.mxu0 0.0
    %513 = vmatprep.subr.mxu0 0.0
    %514 = vmatpush1.xpose.msra.mxu0 0.0
    %515 = vmatprep.subr.mxu0 0.0
    %516 = vmatpush1.xpose.msra.mxu0 0.0
    %517 = vmatprep.subr.mxu0 0.0
    %518 = vmatpush1.xpose.msra.mxu0 0.0
    %519 = vmatprep.subr.mxu0 0.0
    %520 = vmatpush1.xpose.msra.mxu0 0.0
    %521 = vmatprep.subr.mxu0 0.0
    %522 = vmatpush1.xpose.msra.mxu0 0.0
    %523 = vmatprep.subr.mxu0 0.0
    %524 = vmatpush1.xpose.msra.mxu0 0.0
    %525 = vmatprep.subr.mxu0 0.0
    %526 = vmatpush1.xpose.msra.mxu0 0.0
    %527 = vmatprep.subr.mxu0 0.0
    %528 = vmatpush1.xpose.msra.mxu0 0.0
    %529 = vmatprep.subr.mxu0 0.0
    %530 = vmatpush1.xpose.msra.mxu0 0.0
    %531 = vmatprep.subr.mxu0 0.0
    %532 = vmatpush1.xpose.msra.mxu0 0.0
    %533 = vmatprep.subr.mxu0 0.0
    %534 = vmatpush1.xpose.msra.mxu0 0.0
    %535 = vmatprep.subr.mxu0 0.0
    %536 = vmatpush1.xpose.msra.mxu0 0.0
    %537 = vmatprep.subr.mxu0 0.0
    %538 = vmatpush1.xpose.msra.mxu0 0.0
    %539 = vmatprep.subr.mxu0 0.0
    %540 = vmatpush1.xpose.msra.mxu0 0.0
    %541 = vmatprep.subr.mxu0 0.0
    %542 = vmatpush1.xpose.msra.mxu0 0.0
    %543 = vmatprep.mubr.f32.mxu0 0.0
    %544 = vmatmul.mubr.f32.gmra.mrb[0].mxu0 %v66
    %v545 = vpop.f32.mrb[0].mxu0
    %v546 = vadd.f32 0.0, %v545
    %v547 = vpop.f32.mrb[0].mxu0
    %548 = vmatprep.mubr.f32.mxu0 0.0
    %549 = vmatmul.mubr.f32.gmra.mrb[0].mxu0 %v67
    %v550 = vpop.f32.mrb[0].mxu0
    %v551 = vadd.f32 0.0, %v550
    %v552 = vpop.f32.mrb[0].mxu0
    %553 = vdwg.mxu0
    %554 = vmatprep.subr.mxu0 0.0
    %555 = vmatpush1.xpose.msra.mxu0 %v84
    %556 = vmatprep.subr.mxu0 0.0
    %557 = vmatpush1.xpose.msra.mxu0 %v85
    %558 = vmatprep.subr.mxu0 0.0
    %559 = vmatpush1.xpose.msra.mxu0 0.0
    %560 = vmatprep.subr.mxu0 0.0
    %561 = vmatpush1.xpose.msra.mxu0 0.0
    %562 = vmatprep.subr.mxu0 0.0
    %563 = vmatpush1.xpose.msra.mxu0 0.0
    %564 = vmatprep.subr.mxu0 0.0
    %565 = vmatpush1.xpose.msra.mxu0 0.0
    %566 = vmatprep.subr.mxu0 0.0
    %567 = vmatpush1.xpose.msra.mxu0 0.0
    %568 = vmatprep.subr.mxu0 0.0
    %569 = vmatpush1.xpose.msra.mxu0 0.0
    %570 = vmatprep.subr.mxu0 0.0
    %571 = vmatpush1.xpose.msra.mxu0 0.0
    %572 = vmatprep.subr.mxu0 0.0
    %573 = vmatpush1.xpose.msra.mxu0 0.0
    %574 = vmatprep.subr.mxu0 0.0
    %575 = vmatpush1.xpose.msra.mxu0 0.0
    %576 = vmatprep.subr.mxu0 0.0
    %577 = vmatpush1.xpose.msra.mxu0 0.0
    %578 = vmatprep.subr.mxu0 0.0
    %579 = vmatpush1.xpose.msra.mxu0 0.0
    %580 = vmatprep.subr.mxu0 0.0
    %581 = vmatpush1.xpose.msra.mxu0 0.0
    %582 = vmatprep.subr.mxu0 0.0
    %583 = vmatpush1.xpose.msra.mxu0 0.0
    %584 = vmatprep.subr.mxu0 0.0
    %585 = vmatpush1.xpose.msra.mxu0 0.0
    %586 = vmatprep.subr.mxu0 0.0
    %587 = vmatpush1.xpose.msra.mxu0 0.0
    %588 = vmatprep.subr.mxu0 0.0
    %589 = vmatpush1.xpose.msra.mxu0 0.0
    %590 = vmatprep.subr.mxu0 0.0
    %591 = vmatpush1.xpose.msra.mxu0 0.0
    %592 = vmatprep.subr.mxu0 0.0
    %593 = vmatpush1.xpose.msra.mxu0 0.0
    %594 = vmatprep.subr.mxu0 0.0
    %595 = vmatpush1.xpose.msra.mxu0 0.0
    %596 = vmatprep.subr.mxu0 0.0
    %597 = vmatpush1.xpose.msra.mxu0 0.0
    %598 = vmatprep.subr.mxu0 0.0
    %599 = vmatpush1.xpose.msra.mxu0 0.0
    %600 = vmatprep.subr.mxu0 0.0
    %601 = vmatpush1.xpose.msra.mxu0 0.0
    %602 = vmatprep.subr.mxu0 0.0
    %603 = vmatpush1.xpose.msra.mxu0 0.0
    %604 = vmatprep.subr.mxu0 0.0
    %605 = vmatpush1.xpose.msra.mxu0 0.0
    %606 = vmatprep.subr.mxu0 0.0
    %607 = vmatpush1.xpose.msra.mxu0 0.0
    %608 = vmatprep.subr.mxu0 0.0
    %609 = vmatpush1.xpose.msra.mxu0 0.0
    %610 = vmatprep.subr.mxu0 0.0
    %611 = vmatpush1.xpose.msra.mxu0 0.0
    %612 = vmatprep.subr.mxu0 0.0
    %613 = vmatpush1.xpose.msra.mxu0 0.0
    %614 = vmatprep.subr.mxu0 0.0
    %615 = vmatpush1.xpose.msra.mxu0 0.0
    %616 = vmatprep.subr.mxu0 0.0
    %617 = vmatpush1.xpose.msra.mxu0 0.0
    %618 = vmatprep.mubr.f32.mxu0 0.0
    %619 = vmatmul.mubr.f32.gmra.mrb[0].mxu0 %v68
    %v620 = vpop.f32.mrb[0].mxu0
    %v621 = vadd.f32 0.0, %v620
    %v622 = vpop.f32.mrb[0].mxu0
    %623 = vmatprep.mubr.f32.mxu0 0.0
    %624 = vmatmul.mubr.f32.gmra.mrb[0].mxu0 %v69
    %v625 = vpop.f32.mrb[0].mxu0
    %v626 = vadd.f32 0.0, %v625
    %v627 = vpop.f32.mrb[0].mxu0
    %628 = vdwg.mxu0
    %629 = vmatprep.subr.mxu0 0.0
    %630 = vmatpush1.xpose.msra.mxu0 %v86
    %631 = vmatprep.subr.mxu0 0.0
    %632 = vmatpush1.xpose.msra.mxu0 %v87
    %633 = vmatprep.subr.mxu0 0.0
    %634 = vmatpush1.xpose.msra.mxu0 0.0
    %635 = vmatprep.subr.mxu0 0.0
    %636 = vmatpush1.xpose.msra.mxu0 0.0
    %637 = vmatprep.subr.mxu0 0.0
    %638 = vmatpush1.xpose.msra.mxu0 0.0
    %639 = vmatprep.subr.mxu0 0.0
    %640 = vmatpush1.xpose.msra.mxu0 0.0
    %641 = vmatprep.subr.mxu0 0.0
    %642 = vmatpush1.xpose.msra.mxu0 0.0
    %643 = vmatprep.subr.mxu0 0.0
    %644 = vmatpush1.xpose.msra.mxu0 0.0
    %645 = vmatprep.subr.mxu0 0.0
    %646 = vmatpush1.xpose.msra.mxu0 0.0
    %647 = vmatprep.subr.mxu0 0.0
    %648 = vmatpush1.xpose.msra.mxu0 0.0
    %649 = vmatprep.subr.mxu0 0.0
    %650 = vmatpush1.xpose.msra.mxu0 0.0
    %651 = vmatprep.subr.mxu0 0.0
    %652 = vmatpush1.xpose.msra.mxu0 0.0
    %653 = vmatprep.subr.mxu0 0.0
    %654 = vmatpush1.xpose.msra.mxu0 0.0
    %655 = vmatprep.subr.mxu0 0.0
    %656 = vmatpush1.xpose.msra.mxu0 0.0
    %657 = vmatprep.subr.mxu0 0.0
    %658 = vmatpush1.xpose.msra.mxu0 0.0
    %659 = vmatprep.subr.mxu0 0.0
    %660 = vmatpush1.xpose.msra.mxu0 0.0
    %661 = vmatprep.subr.mxu0 0.0
    %662 = vmatpush1.xpose.msra.mxu0 0.0
    %663 = vmatprep.subr.mxu0 0.0
    %664 = vmatpush1.xpose.msra.mxu0 0.0
    %665 = vmatprep.subr.mxu0 0.0
    %666 = vmatpush1.xpose.msra.mxu0 0.0
    %667 = vmatprep.subr.mxu0 0.0
    %668 = vmatpush1.xpose.msra.mxu0 0.0
    %669 = vmatprep.subr.mxu0 0.0
    %670 = vmatpush1.xpose.msra.mxu0 0.0
    %671 = vmatprep.subr.mxu0 0.0
    %672 = vmatpush1.xpose.msra.mxu0 0.0
    %673 = vmatprep.subr.mxu0 0.0
    %674 = vmatpush1.xpose.msra.mxu0 0.0
    %675 = vmatprep.subr.mxu0 0.0
    %676 = vmatpush1.xpose.msra.mxu0 0.0
    %677 = vmatprep.subr.mxu0 0.0
    %678 = vmatpush1.xpose.msra.mxu0 0.0
    %679 = vmatprep.subr.mxu0 0.0
    %680 = vmatpush1.xpose.msra.mxu0 0.0
    %681 = vmatprep.subr.mxu0 0.0
    %682 = vmatpush1.xpose.msra.mxu0 0.0
    %683 = vmatprep.subr.mxu0 0.0
    %684 = vmatpush1.xpose.msra.mxu0 0.0
    %685 = vmatprep.subr.mxu0 0.0
    %686 = vmatpush1.xpose.msra.mxu0 0.0
    %687 = vmatprep.subr.mxu0 0.0
    %688 = vmatpush1.xpose.msra.mxu0 0.0
    %689 = vmatprep.subr.mxu0 0.0
    %690 = vmatpush1.xpose.msra.mxu0 0.0
    %691 = vmatprep.subr.mxu0 0.0
    %692 = vmatpush1.xpose.msra.mxu0 0.0
    %693 = vmatprep.mubr.f32.mxu0 0.0
    %694 = vmatmul.mubr.f32.gmra.mrb[0].mxu0 %v70
    %v695 = vpop.f32.mrb[0].mxu0
    %v696 = vadd.f32 0.0, %v695
    %v697 = vpop.f32.mrb[0].mxu0
    %698 = vmatprep.mubr.f32.mxu0 0.0
    %699 = vmatmul.mubr.f32.gmra.mrb[0].mxu0 %v71
    %v700 = vpop.f32.mrb[0].mxu0
    %v701 = vadd.f32 0.0, %v700
    %v702 = vpop.f32.mrb[0].mxu0
    %703 = vdwg.mxu0
    %v704 = vmul.f32 %v171, 0.088388346
    %v705 = vmul.f32 %v176, 0.088388346
    %v706 = vmul.f32 %v246, 0.088388346
    %v707 = vmul.f32 %v251, 0.088388346
    %v708 = vmul.f32 %v321, 0.088388346
    %v709 = vmul.f32 %v326, 0.088388346
    %v710 = vmul.f32 %v396, 0.088388346
    %v711 = vmul.f32 %v401, 0.088388346
    %v712 = vmul.f32 %v471, 0.088388346
    %v713 = vmul.f32 %v476, 0.088388346
    %v714 = vmul.f32 %v546, 0.088388346
    %v715 = vmul.f32 %v551, 0.088388346
    %v716 = vmul.f32 %v621, 0.088388346
    %v717 = vmul.f32 %v626, 0.088388346
    %v718 = vmul.f32 %v696, 0.088388346
    %v719 = vmul.f32 %v701, 0.088388346
    %vm720 = vcmask 130048
    %v721 = vsel %vm720, %v704, -inf
    %v722 = vsel %vm720, %v706, -inf
    %v723 = vmax.f32 %v721, %v722
    %v724 = vsel %vm720, %v708, -inf
    %v725 = vmax.f32 %v723, %v724
    %v726 = vsel %vm720, %v710, -inf
    %v727 = vmax.f32 %v725, %v726
    %v728 = vsel %vm720, %v705, -inf
    %v729 = vsel %vm720, %v707, -inf
    %v730 = vmax.f32 %v728, %v729
    %v731 = vsel %vm720, %v709, -inf
    %v732 = vmax.f32 %v730, %v731
    %v733 = vsel %vm720, %v711, -inf
    %v734 = vmax.f32 %v732, %v733
    %v735 = vsel %vm720, %v712, -inf
    %v736 = vsel %vm720, %v714, -inf
    %v737 = vmax.f32 %v735, %v736
    %v738 = vsel %vm720, %v716, -inf
    %v739 = vmax.f32 %v737, %v738
    %v740 = vsel %vm720, %v718, -inf
    %v741 = vmax.f32 %v739, %v740
    %v742 = vsel %vm720, %v713, -inf
    %v743 = vsel %vm720, %v715, -inf
    %v744 = vmax.f32 %v742, %v743
    %v745 = vsel %vm720, %v717, -inf
    %v746 = vmax.f32 %v744, %v745
    %v747 = vsel %vm720, %v719, -inf
    %v748 = vmax.f32 %v746, %v747
    %v749 = vsub.f32 %v704, %v727
    %v750 = vsub.f32 %v705, %v734
    %v751 = vsub.f32 %v706, %v727
    %v752 = vsub.f32 %v707, %v734
    %v753 = vsub.f32 %v708, %v727
    %v754 = vsub.f32 %v709, %v734
    %v755 = vsub.f32 %v710, %v727
    %v756 = vsub.f32 %v711, %v734
    %v757 = vsub.f32 %v712, %v741
    %v758 = vsub.f32 %v713, %v748
    %v759 = vsub.f32 %v714, %v741
    %v760 = vsub.f32 %v715, %v748
    %v761 = vsub.f32 %v716, %v741
    %v762 = vsub.f32 %v717, %v748
    %v763 = vsub.f32 %v718, %v741
    %v764 = vsub.f32 %v719, %v748
    %v765 = vmul.f32 %v749, 1.442695
    %v766 = vpow.pop %v765
    %v767 = vmul.f32 %v750, 1.442695
    %v768 = vpow.pop %v767
    %v769 = vmul.f32 %v751, 1.442695
    %v770 = vpow.pop %v769
    %v771 = vmul.f32 %v752, 1.442695
    %v772 = vpow.pop %v771
    %v773 = vmul.f32 %v753, 1.442695
    %v774 = vpow.pop %v773
    %v775 = vmul.f32 %v754, 1.442695
    %v776 = vpow.pop %v775
    %v777 = vmul.f32 %v755, 1.442695
    %v778 = vpow.pop %v777
    %v779 = vmul.f32 %v756, 1.442695
    %v780 = vpow.pop %v779
    %v781 = vmul.f32 %v757, 1.442695
    %v782 = vpow.pop %v781
    %v783 = vmul.f32 %v758, 1.442695
    %v784 = vpow.pop %v783
    %v785 = vmul.f32 %v759, 1.442695
    %v786 = vpow.pop %v785
    %v787 = vmul.f32 %v760, 1.442695
    %v788 = vpow.pop %v787
    %v789 = vmul.f32 %v761, 1.442695
    %v790 = vpow.pop %v789
    %v791 = vmul.f32 %v762, 1.442695
    %v792 = vpow.pop %v791
    %v793 = vmul.f32 %v763, 1.442695
    %v794 = vpow.pop %v793
    %v795 = vmul.f32 %v764, 1.442695
    %v796 = vpow.pop %v795
    %v797 = vsel %vm720, %v766, 0.0
    %v798 = vsel %vm720, %v770, 0.0
    %v799 = vadd.f32 %v797, %v798
    %v800 = vsel %vm720, %v774, 0.0
    %v801 = vadd.f32 %v799, %v800
    %v802 = vsel %vm720, %v778, 0.0
    %v803 = vadd.f32 %v801, %v802
    %v804 = vsel %vm720, %v768, 0.0
    %v805 = vsel %vm720, %v772, 0.0
    %v806 = vadd.f32 %v804, %v805
    %v807 = vsel %vm720, %v776, 0.0
    %v808 = vadd.f32 %v806, %v807
    %v809 = vsel %vm720, %v780, 0.0
    %v810 = vadd.f32 %v808, %v809
    %v811 = vsel %vm720, %v782, 0.0
    %v812 = vsel %vm720, %v786, 0.0
    %v813 = vadd.f32 %v811, %v812
    %v814 = vsel %vm720, %v790, 0.0
    %v815 = vadd.f32 %v813, %v814
    %v816 = vsel %vm720, %v794, 0.0
    %v817 = vadd.f32 %v815, %v816
    %v818 = vsel %vm720, %v784, 0.0
    %v819 = vsel %vm720, %v788, 0.0
    %v820 = vadd.f32 %v818, %v819
    %v821 = vsel %vm720, %v792, 0.0
    %v822 = vadd.f32 %v820, %v821
    %v823 = vsel %vm720, %v796, 0.0
    %v824 = vadd.f32 %v822, %v823
    %v825 = vrcp.pop %v803
    %v826 = vmul.f32 %v766, %v825
    %v827 = vrcp.pop %v810
    %v828 = vmul.f32 %v768, %v827
    %v829 = vmul.f32 %v770, %v825
    %v830 = vmul.f32 %v772, %v827
    %v831 = vmul.f32 %v774, %v825
    %v832 = vmul.f32 %v776, %v827
    %v833 = vmul.f32 %v778, %v825
    %v834 = vmul.f32 %v780, %v827
    %v835 = vrcp.pop %v817
    %v836 = vmul.f32 %v782, %v835
    %v837 = vrcp.pop %v824
    %v838 = vmul.f32 %v784, %v837
    %v839 = vmul.f32 %v786, %v835
    %v840 = vmul.f32 %v788, %v837
    %v841 = vmul.f32 %v790, %v835
    %v842 = vmul.f32 %v792, %v837
    %v843 = vmul.f32 %v794, %v835
    %v844 = vmul.f32 %v796, %v837
    %v846 = vsel %vm720, %v826, 0
    %v849 = vsel %vm720, %v828, 0
    %851 = vmatprep.subr.mxu0 0.0
    %852 = vmatpush1.msra.mxu0 %v88
    %853 = vmatprep.subr.mxu0 0.0
    %854 = vmatpush1.msra.mxu0 %v89
    %855 = vmatprep.subr.mxu0 0.0
    %856 = vmatpush1.msra.mxu0 0.0
    %857 = vmatprep.subr.mxu0 0.0
    %858 = vmatpush1.msra.mxu0 0.0
    %859 = vmatprep.subr.mxu0 0.0
    %860 = vmatpush1.msra.mxu0 0.0
    %861 = vmatprep.subr.mxu0 0.0
    %862 = vmatpush1.msra.mxu0 0.0
    %863 = vmatprep.subr.mxu0 0.0
    %864 = vmatpush1.msra.mxu0 0.0
    %865 = vmatprep.subr.mxu0 0.0
    %866 = vmatpush1.msra.mxu0 0.0
    %867 = vmatprep.subr.mxu0 0.0
    %868 = vmatpush1.msra.mxu0 0.0
    %869 = vmatprep.subr.mxu0 0.0
    %870 = vmatpush1.msra.mxu0 0.0
    %871 = vmatprep.subr.mxu0 0.0
    %872 = vmatpush1.msra.mxu0 0.0
    %873 = vmatprep.subr.mxu0 0.0
    %874 = vmatpush1.msra.mxu0 0.0
    %875 = vmatprep.subr.mxu0 0.0
    %876 = vmatpush1.msra.mxu0 0.0
    %877 = vmatprep.subr.mxu0 0.0
    %878 = vmatpush1.msra.mxu0 0.0
    %879 = vmatprep.subr.mxu0 0.0
    %880 = vmatpush1.msra.mxu0 0.0
    %881 = vmatprep.subr.mxu0 0.0
    %882 = vmatpush1.msra.mxu0 0.0
    %883 = vmatprep.subr.mxu0 0.0
    %884 = vmatpush1.msra.mxu0 0.0
    %885 = vmatprep.subr.mxu0 0.0
    %886 = vmatpush1.msra.mxu0 0.0
    %887 = vmatprep.subr.mxu0 0.0
    %888 = vmatpush1.msra.mxu0 0.0
    %889 = vmatprep.subr.mxu0 0.0
    %890 = vmatpush1.msra.mxu0 0.0
    %891 = vmatprep.subr.mxu0 0.0
    %892 = vmatpush1.msra.mxu0 0.0
    %893 = vmatprep.subr.mxu0 0.0
    %894 = vmatpush1.msra.mxu0 0.0
    %895 = vmatprep.subr.mxu0 0.0
    %896 = vmatpush1.msra.mxu0 0.0
    %897 = vmatprep.subr.mxu0 0.0
    %898 = vmatpush1.msra.mxu0 0.0
    %899 = vmatprep.subr.mxu0 0.0
    %900 = vmatpush1.msra.mxu0 0.0
    %901 = vmatprep.subr.mxu0 0.0
    %902 = vmatpush1.msra.mxu0 0.0
    %903 = vmatprep.subr.mxu0 0.0
    %904 = vmatpush1.msra.mxu0 0.0
    %905 = vmatprep.subr.mxu0 0.0
    %906 = vmatpush1.msra.mxu0 0.0
    %907 = vmatprep.subr.mxu0 0.0
    %908 = vmatpush1.msra.mxu0 0.0
    %909 = vmatprep.subr.mxu0 0.0
    %910 = vmatpush1.msra.mxu0 0.0
    %911 = vmatprep.subr.mxu0 0.0
    %912 = vmatpush1.msra.mxu0 0.0
    %913 = vmatprep.subr.mxu0 0.0
    %914 = vmatpush1.msra.mxu0 0.0
    %915 = vmatprep.mubr.f32.mxu0 0.0
    %916 = vmatmul.mubr.f32.gmra.mrb[0].mxu0 %v846
    %v917 = vpop.f32.mrb[0].mxu0
    %v918 = vadd.f32 0.0, %v917
    %v919 = vpop.f32.mrb[0].mxu0
    %920 = vmatprep.mubr.f32.mxu0 0.0
    %921 = vmatmul.mubr.f32.gmra.mrb[0].mxu0 %v849
    %v922 = vpop.f32.mrb[0].mxu0
    %v923 = vadd.f32 0.0, %v922
    %v924 = vpop.f32.mrb[0].mxu0
    %925 = vdwg.mxu0
    %v927 = vsel %vm720, %v829, 0
    %v930 = vsel %vm720, %v830, 0
    %932 = vmatprep.subr.mxu0 0.0
    %933 = vmatpush1.msra.mxu0 %v90
    %934 = vmatprep.subr.mxu0 0.0
    %935 = vmatpush1.msra.mxu0 %v91
    %936 = vmatprep.subr.mxu0 0.0
    %937 = vmatpush1.msra.mxu0 0.0
    %938 = vmatprep.subr.mxu0 0.0
    %939 = vmatpush1.msra.mxu0 0.0
    %940 = vmatprep.subr.mxu0 0.0
    %941 = vmatpush1.msra.mxu0 0.0
    %942 = vmatprep.subr.mxu0 0.0
    %943 = vmatpush1.msra.mxu0 0.0
    %944 = vmatprep.subr.mxu0 0.0
    %945 = vmatpush1.msra.mxu0 0.0
    %946 = vmatprep.subr.mxu0 0.0
    %947 = vmatpush1.msra.mxu0 0.0
    %948 = vmatprep.subr.mxu0 0.0
    %949 = vmatpush1.msra.mxu0 0.0
    %950 = vmatprep.subr.mxu0 0.0
    %951 = vmatpush1.msra.mxu0 0.0
    %952 = vmatprep.subr.mxu0 0.0
    %953 = vmatpush1.msra.mxu0 0.0
    %954 = vmatprep.subr.mxu0 0.0
    %955 = vmatpush1.msra.mxu0 0.0
    %956 = vmatprep.subr.mxu0 0.0
    %957 = vmatpush1.msra.mxu0 0.0
    %958 = vmatprep.subr.mxu0 0.0
    %959 = vmatpush1.msra.mxu0 0.0
    %960 = vmatprep.subr.mxu0 0.0
    %961 = vmatpush1.msra.mxu0 0.0
    %962 = vmatprep.subr.mxu0 0.0
    %963 = vmatpush1.msra.mxu0 0.0
    %964 = vmatprep.subr.mxu0 0.0
    %965 = vmatpush1.msra.mxu0 0.0
    %966 = vmatprep.subr.mxu0 0.0
    %967 = vmatpush1.msra.mxu0 0.0
    %968 = vmatprep.subr.mxu0 0.0
    %969 = vmatpush1.msra.mxu0 0.0
    %970 = vmatprep.subr.mxu0 0.0
    %971 = vmatpush1.msra.mxu0 0.0
    %972 = vmatprep.subr.mxu0 0.0
    %973 = vmatpush1.msra.mxu0 0.0
    %974 = vmatprep.subr.mxu0 0.0
    %975 = vmatpush1.msra.mxu0 0.0
    %976 = vmatprep.subr.mxu0 0.0
    %977 = vmatpush1.msra.mxu0 0.0
    %978 = vmatprep.subr.mxu0 0.0
    %979 = vmatpush1.msra.mxu0 0.0
    %980 = vmatprep.subr.mxu0 0.0
    %981 = vmatpush1.msra.mxu0 0.0
    %982 = vmatprep.subr.mxu0 0.0
    %983 = vmatpush1.msra.mxu0 0.0
    %984 = vmatprep.subr.mxu0 0.0
    %985 = vmatpush1.msra.mxu0 0.0
    %986 = vmatprep.subr.mxu0 0.0
    %987 = vmatpush1.msra.mxu0 0.0
    %988 = vmatprep.subr.mxu0 0.0
    %989 = vmatpush1.msra.mxu0 0.0
    %990 = vmatprep.subr.mxu0 0.0
    %991 = vmatpush1.msra.mxu0 0.0
    %992 = vmatprep.subr.mxu0 0.0
    %993 = vmatpush1.msra.mxu0 0.0
    %994 = vmatprep.subr.mxu0 0.0
    %995 = vmatpush1.msra.mxu0 0.0
    %996 = vmatprep.mubr.f32.mxu0 0.0
    %997 = vmatmul.mubr.f32.gmra.mrb[0].mxu0 %v927
    %v998 = vpop.f32.mrb[0].mxu0
    %v999 = vadd.f32 0.0, %v998
    %v1000 = vpop.f32.mrb[0].mxu0
    %1001 = vmatprep.mubr.f32.mxu0 0.0
    %1002 = vmatmul.mubr.f32.gmra.mrb[0].mxu0 %v930
    %v1003 = vpop.f32.mrb[0].mxu0
    %v1004 = vadd.f32 0.0, %v1003
    %v1005 = vpop.f32.mrb[0].mxu0
    %1006 = vdwg.mxu0
    %v1008 = vsel %vm720, %v831, 0
    %v1011 = vsel %vm720, %v832, 0
    %1013 = vmatprep.subr.mxu0 0.0
    %1014 = vmatpush1.msra.mxu0 %v92
    %1015 = vmatprep.subr.mxu0 0.0
    %1016 = vmatpush1.msra.mxu0 %v93
    %1017 = vmatprep.subr.mxu0 0.0
    %1018 = vmatpush1.msra.mxu0 0.0
    %1019 = vmatprep.subr.mxu0 0.0
    %1020 = vmatpush1.msra.mxu0 0.0
    %1021 = vmatprep.subr.mxu0 0.0
    %1022 = vmatpush1.msra.mxu0 0.0
    %1023 = vmatprep.subr.mxu0 0.0
    %1024 = vmatpush1.msra.mxu0 0.0
    %1025 = vmatprep.subr.mxu0 0.0
    %1026 = vmatpush1.msra.mxu0 0.0
    %1027 = vmatprep.subr.mxu0 0.0
    %1028 = vmatpush1.msra.mxu0 0.0
    %1029 = vmatprep.subr.mxu0 0.0
    %1030 = vmatpush1.msra.mxu0 0.0
    %1031 = vmatprep.subr.mxu0 0.0
    %1032 = vmatpush1.msra.mxu0 0.0
    %1033 = vmatprep.subr.mxu0 0.0
    %1034 = vmatpush1.msra.mxu0 0.0
    %1035 = vmatprep.subr.mxu0 0.0
    %1036 = vmatpush1.msra.mxu0 0.0
    %1037 = vmatprep.subr.mxu0 0.0
    %1038 = vmatpush1.msra.mxu0 0.0
    %1039 = vmatprep.subr.mxu0 0.0
    %1040 = vmatpush1.msra.mxu0 0.0
    %1041 = vmatprep.subr.mxu0 0.0
    %1042 = vmatpush1.msra.mxu0 0.0
    %1043 = vmatprep.subr.mxu0 0.0
    %1044 = vmatpush1.msra.mxu0 0.0
    %1045 = vmatprep.subr.mxu0 0.0
    %1046 = vmatpush1.msra.mxu0 0.0
    %1047 = vmatprep.subr.mxu0 0.0
    %1048 = vmatpush1.msra.mxu0 0.0
    %1049 = vmatprep.subr.mxu0 0.0
    %1050 = vmatpush1.msra.mxu0 0.0
    %1051 = vmatprep.subr.mxu0 0.0
    %1052 = vmatpush1.msra.mxu0 0.0
    %1053 = vmatprep.subr.mxu0 0.0
    %1054 = vmatpush1.msra.mxu0 0.0
    %1055 = vmatprep.subr.mxu0 0.0
    %1056 = vmatpush1.msra.mxu0 0.0
    %1057 = vmatprep.subr.mxu0 0.0
    %1058 = vmatpush1.msra.mxu0 0.0
    %1059 = vmatprep.subr.mxu0 0.0
    %1060 = vmatpush1.msra.mxu0 0.0
    %1061 = vmatprep.subr.mxu0 0.0
    %1062 = vmatpush1.msra.mxu0 0.0
    %1063 = vmatprep.subr.mxu0 0.0
    %1064 = vmatpush1.msra.mxu0 0.0
    %1065 = vmatprep.subr.mxu0 0.0
    %1066 = vmatpush1.msra.mxu0 0.0
    %1067 = vmatprep.subr.mxu0 0.0
    %1068 = vmatpush1.msra.mxu0 0.0
    %1069 = vmatprep.subr.mxu0 0.0
    %1070 = vmatpush1.msra.mxu0 0.0
    %1071 = vmatprep.subr.mxu0 0.0
    %1072 = vmatpush1.msra.mxu0 0.0
    %1073 = vmatprep.subr.mxu0 0.0
    %1074 = vmatpush1.msra.mxu0 0.0
    %1075 = vmatprep.subr.mxu0 0.0
    %1076 = vmatpush1.msra.mxu0 0.0
    %1077 = vmatprep.mubr.f32.mxu0 0.0
    %1078 = vmatmul.mubr.f32.gmra.mrb[0].mxu0 %v1008
    %v1079 = vpop.f32.mrb[0].mxu0
    %v1080 = vadd.f32 0.0, %v1079
    %v1081 = vpop.f32.mrb[0].mxu0
    %1082 = vmatprep.mubr.f32.mxu0 0.0
    %1083 = vmatmul.mubr.f32.gmra.mrb[0].mxu0 %v1011
    %v1084 = vpop.f32.mrb[0].mxu0
    %v1085 = vadd.f32 0.0, %v1084
    %v1086 = vpop.f32.mrb[0].mxu0
    %1087 = vdwg.mxu0
    %v1089 = vsel %vm720, %v833, 0
    %v1092 = vsel %vm720, %v834, 0
    %1094 = vmatprep.subr.mxu0 0.0
    %1095 = vmatpush1.msra.mxu0 %v94
    %1096 = vmatprep.subr.mxu0 0.0
    %1097 = vmatpush1.msra.mxu0 %v95
    %1098 = vmatprep.subr.mxu0 0.0
    %1099 = vmatpush1.msra.mxu0 0.0
    %1100 = vmatprep.subr.mxu0 0.0
    %1101 = vmatpush1.msra.mxu0 0.0
    %1102 = vmatprep.subr.mxu0 0.0
    %1103 = vmatpush1.msra.mxu0 0.0
    %1104 = vmatprep.subr.mxu0 0.0
    %1105 = vmatpush1.msra.mxu0 0.0
    %1106 = vmatprep.subr.mxu0 0.0
    %1107 = vmatpush1.msra.mxu0 0.0
    %1108 = vmatprep.subr.mxu0 0.0
    %1109 = vmatpush1.msra.mxu0 0.0
    %1110 = vmatprep.subr.mxu0 0.0
    %1111 = vmatpush1.msra.mxu0 0.0
    %1112 = vmatprep.subr.mxu0 0.0
    %1113 = vmatpush1.msra.mxu0 0.0
    %1114 = vmatprep.subr.mxu0 0.0
    %1115 = vmatpush1.msra.mxu0 0.0
    %1116 = vmatprep.subr.mxu0 0.0
    %1117 = vmatpush1.msra.mxu0 0.0
    %1118 = vmatprep.subr.mxu0 0.0
    %1119 = vmatpush1.msra.mxu0 0.0
    %1120 = vmatprep.subr.mxu0 0.0
    %1121 = vmatpush1.msra.mxu0 0.0
    %1122 = vmatprep.subr.mxu0 0.0
    %1123 = vmatpush1.msra.mxu0 0.0
    %1124 = vmatprep.subr.mxu0 0.0
    %1125 = vmatpush1.msra.mxu0 0.0
    %1126 = vmatprep.subr.mxu0 0.0
    %1127 = vmatpush1.msra.mxu0 0.0
    %1128 = vmatprep.subr.mxu0 0.0
    %1129 = vmatpush1.msra.mxu0 0.0
    %1130 = vmatprep.subr.mxu0 0.0
    %1131 = vmatpush1.msra.mxu0 0.0
    %1132 = vmatprep.subr.mxu0 0.0
    %1133 = vmatpush1.msra.mxu0 0.0
    %1134 = vmatprep.subr.mxu0 0.0
    %1135 = vmatpush1.msra.mxu0 0.0
    %1136 = vmatprep.subr.mxu0 0.0
    %1137 = vmatpush1.msra.mxu0 0.0
    %1138 = vmatprep.subr.mxu0 0.0
    %1139 = vmatpush1.msra.mxu0 0.0
    %1140 = vmatprep.subr.mxu0 0.0
    %1141 = vmatpush1.msra.mxu0 0.0
    %1142 = vmatprep.subr.mxu0 0.0
    %1143 = vmatpush1.msra.mxu0 0.0
    %1144 = vmatprep.subr.mxu0 0.0
    %1145 = vmatpush1.msra.mxu0 0.0
    %1146 = vmatprep.subr.mxu0 0.0
    %1147 = vmatpush1.msra.mxu0 0.0
    %1148 = vmatprep.subr.mxu0 0.0
    %1149 = vmatpush1.msra.mxu0 0.0
    %1150 = vmatprep.subr.mxu0 0.0
    %1151 = vmatpush1.msra.mxu0 0.0
    %1152 = vmatprep.subr.mxu0 0.0
    %1153 = vmatpush1.msra.mxu0 0.0
    %1154 = vmatprep.subr.mxu0 0.0
    %1155 = vmatpush1.msra.mxu0 0.0
    %1156 = vmatprep.subr.mxu0 0.0
    %1157 = vmatpush1.msra.mxu0 0.0
    %1158 = vmatprep.mubr.f32.mxu0 0.0
    %1159 = vmatmul.mubr.f32.gmra.mrb[0].mxu0 %v1089
    %v1160 = vpop.f32.mrb[0].mxu0
    %v1161 = vadd.f32 0.0, %v1160
    %v1162 = vpop.f32.mrb[0].mxu0
    %1163 = vmatprep.mubr.f32.mxu0 0.0
    %1164 = vmatmul.mubr.f32.gmra.mrb[0].mxu0 %v1092
    %v1165 = vpop.f32.mrb[0].mxu0
    %v1166 = vadd.f32 0.0, %v1165
    %v1167 = vpop.f32.mrb[0].mxu0
    %1168 = vdwg.mxu0
    %v1170 = vsel %vm720, %v836, 0
    %v1173 = vsel %vm720, %v838, 0
    %1175 = vmatprep.subr.mxu0 0.0
    %1176 = vmatpush1.msra.mxu0 %v96
    %1177 = vmatprep.subr.mxu0 0.0
    %1178 = vmatpush1.msra.mxu0 %v97
    %1179 = vmatprep.subr.mxu0 0.0
    %1180 = vmatpush1.msra.mxu0 0.0
    %1181 = vmatprep.subr.mxu0 0.0
    %1182 = vmatpush1.msra.mxu0 0.0
    %1183 = vmatprep.subr.mxu0 0.0
    %1184 = vmatpush1.msra.mxu0 0.0
    %1185 = vmatprep.subr.mxu0 0.0
    %1186 = vmatpush1.msra.mxu0 0.0
    %1187 = vmatprep.subr.mxu0 0.0
    %1188 = vmatpush1.msra.mxu0 0.0
    %1189 = vmatprep.subr.mxu0 0.0
    %1190 = vmatpush1.msra.mxu0 0.0
    %1191 = vmatprep.subr.mxu0 0.0
    %1192 = vmatpush1.msra.mxu0 0.0
    %1193 = vmatprep.subr.mxu0 0.0
    %1194 = vmatpush1.msra.mxu0 0.0
    %1195 = vmatprep.subr.mxu0 0.0
    %1196 = vmatpush1.msra.mxu0 0.0
    %1197 = vmatprep.subr.mxu0 0.0
    %1198 = vmatpush1.msra.mxu0 0.0
    %1199 = vmatprep.subr.mxu0 0.0
    %1200 = vmatpush1.msra.mxu0 0.0
    %1201 = vmatprep.subr.mxu0 0.0
    %1202 = vmatpush1.msra.mxu0 0.0
    %1203 = vmatprep.subr.mxu0 0.0
    %1204 = vmatpush1.msra.mxu0 0.0
    %1205 = vmatprep.subr.mxu0 0.0
    %1206 = vmatpush1.msra.mxu0 0.0
    %1207 = vmatprep.subr.mxu0 0.0
    %1208 = vmatpush1.msra.mxu0 0.0
    %1209 = vmatprep.subr.mxu0 0.0
    %1210 = vmatpush1.msra.mxu0 0.0
    %1211 = vmatprep.subr.mxu0 0.0
    %1212 = vmatpush1.msra.mxu0 0.0
    %1213 = vmatprep.subr.mxu0 0.0
    %1214 = vmatpush1.msra.mxu0 0.0
    %1215 = vmatprep.subr.mxu0 0.0
    %1216 = vmatpush1.msra.mxu0 0.0
    %1217 = vmatprep.subr.mxu0 0.0
    %1218 = vmatpush1.msra.mxu0 0.0
    %1219 = vmatprep.subr.mxu0 0.0
    %1220 = vmatpush1.msra.mxu0 0.0
    %1221 = vmatprep.subr.mxu0 0.0
    %1222 = vmatpush1.msra.mxu0 0.0
    %1223 = vmatprep.subr.mxu0 0.0
    %1224 = vmatpush1.msra.mxu0 0.0
    %1225 = vmatprep.subr.mxu0 0.0
    %1226 = vmatpush1.msra.mxu0 0.0
    %1227 = vmatprep.subr.mxu0 0.0
    %1228 = vmatpush1.msra.mxu0 0.0
    %1229 = vmatprep.subr.mxu0 0.0
    %1230 = vmatpush1.msra.mxu0 0.0
    %1231 = vmatprep.subr.mxu0 0.0
    %1232 = vmatpush1.msra.mxu0 0.0
    %1233 = vmatprep.subr.mxu0 0.0
    %1234 = vmatpush1.msra.mxu0 0.0
    %1235 = vmatprep.subr.mxu0 0.0
    %1236 = vmatpush1.msra.mxu0 0.0
    %1237 = vmatprep.subr.mxu0 0.0
    %1238 = vmatpush1.msra.mxu0 0.0
    %1239 = vmatprep.mubr.f32.mxu0 0.0
    %1240 = vmatmul.mubr.f32.gmra.mrb[0].mxu0 %v1170
    %v1241 = vpop.f32.mrb[0].mxu0
    %v1242 = vadd.f32 0.0, %v1241
    %v1243 = vpop.f32.mrb[0].mxu0
    %1244 = vmatprep.mubr.f32.mxu0 0.0
    %1245 = vmatmul.mubr.f32.gmra.mrb[0].mxu0 %v1173
    %v1246 = vpop.f32.mrb[0].mxu0
    %v1247 = vadd.f32 0.0, %v1246
    %v1248 = vpop.f32.mrb[0].mxu0
    %1249 = vdwg.mxu0
    %v1251 = vsel %vm720, %v839, 0
    %v1254 = vsel %vm720, %v840, 0
    %1256 = vmatprep.subr.mxu0 0.0
    %1257 = vmatpush1.msra.mxu0 %v98
    %1258 = vmatprep.subr.mxu0 0.0
    %1259 = vmatpush1.msra.mxu0 %v99
    %1260 = vmatprep.subr.mxu0 0.0
    %1261 = vmatpush1.msra.mxu0 0.0
    %1262 = vmatprep.subr.mxu0 0.0
    %1263 = vmatpush1.msra.mxu0 0.0
    %1264 = vmatprep.subr.mxu0 0.0
    %1265 = vmatpush1.msra.mxu0 0.0
    %1266 = vmatprep.subr.mxu0 0.0
    %1267 = vmatpush1.msra.mxu0 0.0
    %1268 = vmatprep.subr.mxu0 0.0
    %1269 = vmatpush1.msra.mxu0 0.0
    %1270 = vmatprep.subr.mxu0 0.0
    %1271 = vmatpush1.msra.mxu0 0.0
    %1272 = vmatprep.subr.mxu0 0.0
    %1273 = vmatpush1.msra.mxu0 0.0
    %1274 = vmatprep.subr.mxu0 0.0
    %1275 = vmatpush1.msra.mxu0 0.0
    %1276 = vmatprep.subr.mxu0 0.0
    %1277 = vmatpush1.msra.mxu0 0.0
    %1278 = vmatprep.subr.mxu0 0.0
    %1279 = vmatpush1.msra.mxu0 0.0
    %1280 = vmatprep.subr.mxu0 0.0
    %1281 = vmatpush1.msra.mxu0 0.0
    %1282 = vmatprep.subr.mxu0 0.0
    %1283 = vmatpush1.msra.mxu0 0.0
    %1284 = vmatprep.subr.mxu0 0.0
    %1285 = vmatpush1.msra.mxu0 0.0
    %1286 = vmatprep.subr.mxu0 0.0
    %1287 = vmatpush1.msra.mxu0 0.0
    %1288 = vmatprep.subr.mxu0 0.0
    %1289 = vmatpush1.msra.mxu0 0.0
    %1290 = vmatprep.subr.mxu0 0.0
    %1291 = vmatpush1.msra.mxu0 0.0
    %1292 = vmatprep.subr.mxu0 0.0
    %1293 = vmatpush1.msra.mxu0 0.0
    %1294 = vmatprep.subr.mxu0 0.0
    %1295 = vmatpush1.msra.mxu0 0.0
    %1296 = vmatprep.subr.mxu0 0.0
    %1297 = vmatpush1.msra.mxu0 0.0
    %1298 = vmatprep.subr.mxu0 0.0
    %1299 = vmatpush1.msra.mxu0 0.0
    %1300 = vmatprep.subr.mxu0 0.0
    %1301 = vmatpush1.msra.mxu0 0.0
    %1302 = vmatprep.subr.mxu0 0.0
    %1303 = vmatpush1.msra.mxu0 0.0
    %1304 = vmatprep.subr.mxu0 0.0
    %1305 = vmatpush1.msra.mxu0 0.0
    %1306 = vmatprep.subr.mxu0 0.0
    %1307 = vmatpush1.msra.mxu0 0.0
    %1308 = vmatprep.subr.mxu0 0.0
    %1309 = vmatpush1.msra.mxu0 0.0
    %1310 = vmatprep.subr.mxu0 0.0
    %1311 = vmatpush1.msra.mxu0 0.0
    %1312 = vmatprep.subr.mxu0 0.0
    %1313 = vmatpush1.msra.mxu0 0.0
    %1314 = vmatprep.subr.mxu0 0.0
    %1315 = vmatpush1.msra.mxu0 0.0
    %1316 = vmatprep.subr.mxu0 0.0
    %1317 = vmatpush1.msra.mxu0 0.0
    %1318 = vmatprep.subr.mxu0 0.0
    %1319 = vmatpush1.msra.mxu0 0.0
    %1320 = vmatprep.mubr.f32.mxu0 0.0
    %1321 = vmatmul.mubr.f32.gmra.mrb[0].mxu0 %v1251
    %v1322 = vpop.f32.mrb[0].mxu0
    %v1323 = vadd.f32 0.0, %v1322
    %v1324 = vpop.f32.mrb[0].mxu0
    %1325 = vmatprep.mubr.f32.mxu0 0.0
    %1326 = vmatmul.mubr.f32.gmra.mrb[0].mxu0 %v1254
    %v1327 = vpop.f32.mrb[0].mxu0
    %v1328 = vadd.f32 0.0, %v1327
    %v1329 = vpop.f32.mrb[0].mxu0
    %1330 = vdwg.mxu0
    %v1332 = vsel %vm720, %v841, 0
    %v1335 = vsel %vm720, %v842, 0
    %1337 = vmatprep.subr.mxu0 0.0
    %1338 = vmatpush1.msra.mxu0 %v100
    %1339 = vmatprep.subr.mxu0 0.0
    %1340 = vmatpush1.msra.mxu0 %v101
    %1341 = vmatprep.subr.mxu0 0.0
    %1342 = vmatpush1.msra.mxu0 0.0
    %1343 = vmatprep.subr.mxu0 0.0
    %1344 = vmatpush1.msra.mxu0 0.0
    %1345 = vmatprep.subr.mxu0 0.0
    %1346 = vmatpush1.msra.mxu0 0.0
    %1347 = vmatprep.subr.mxu0 0.0
    %1348 = vmatpush1.msra.mxu0 0.0
    %1349 = vmatprep.subr.mxu0 0.0
    %1350 = vmatpush1.msra.mxu0 0.0
    %1351 = vmatprep.subr.mxu0 0.0
    %1352 = vmatpush1.msra.mxu0 0.0
    %1353 = vmatprep.subr.mxu0 0.0
    %1354 = vmatpush1.msra.mxu0 0.0
    %1355 = vmatprep.subr.mxu0 0.0
    %1356 = vmatpush1.msra.mxu0 0.0
    %1357 = vmatprep.subr.mxu0 0.0
    %1358 = vmatpush1.msra.mxu0 0.0
    %1359 = vmatprep.subr.mxu0 0.0
    %1360 = vmatpush1.msra.mxu0 0.0
    %1361 = vmatprep.subr.mxu0 0.0
    %1362 = vmatpush1.msra.mxu0 0.0
    %1363 = vmatprep.subr.mxu0 0.0
    %1364 = vmatpush1.msra.mxu0 0.0
    %1365 = vmatprep.subr.mxu0 0.0
    %1366 = vmatpush1.msra.mxu0 0.0
    %1367 = vmatprep.subr.mxu0 0.0
    %1368 = vmatpush1.msra.mxu0 0.0
    %1369 = vmatprep.subr.mxu0 0.0
    %1370 = vmatpush1.msra.mxu0 0.0
    %1371 = vmatprep.subr.mxu0 0.0
    %1372 = vmatpush1.msra.mxu0 0.0
    %1373 = vmatprep.subr.mxu0 0.0
    %1374 = vmatpush1.msra.mxu0 0.0
    %1375 = vmatprep.subr.mxu0 0.0
    %1376 = vmatpush1.msra.mxu0 0.0
    %1377 = vmatprep.subr.mxu0 0.0
    %1378 = vmatpush1.msra.mxu0 0.0
    %1379 = vmatprep.subr.mxu0 0.0
    %1380 = vmatpush1.msra.mxu0 0.0
    %1381 = vmatprep.subr.mxu0 0.0
    %1382 = vmatpush1.msra.mxu0 0.0
    %1383 = vmatprep.subr.mxu0 0.0
    %1384 = vmatpush1.msra.mxu0 0.0
    %1385 = vmatprep.subr.mxu0 0.0
    %1386 = vmatpush1.msra.mxu0 0.0
    %1387 = vmatprep.subr.mxu0 0.0
    %1388 = vmatpush1.msra.mxu0 0.0
    %1389 = vmatprep.subr.mxu0 0.0
    %1390 = vmatpush1.msra.mxu0 0.0
    %1391 = vmatprep.subr.mxu0 0.0
    %1392 = vmatpush1.msra.mxu0 0.0
    %1393 = vmatprep.subr.mxu0 0.0
    %1394 = vmatpush1.msra.mxu0 0.0
    %1395 = vmatprep.subr.mxu0 0.0
    %1396 = vmatpush1.msra.mxu0 0.0
    %1397 = vmatprep.subr.mxu0 0.0
    %1398 = vmatpush1.msra.mxu0 0.0
    %1399 = vmatprep.subr.mxu0 0.0
    %1400 = vmatpush1.msra.mxu0 0.0
    %1401 = vmatprep.mubr.f32.mxu0 0.0
    %1402 = vmatmul.mubr.f32.gmra.mrb[0].mxu0 %v1332
    %v1403 = vpop.f32.mrb[0].mxu0
    %v1404 = vadd.f32 0.0, %v1403
    %v1405 = vpop.f32.mrb[0].mxu0
    %1406 = vmatprep.mubr.f32.mxu0 0.0
    %1407 = vmatmul.mubr.f32.gmra.mrb[0].mxu0 %v1335
    %v1408 = vpop.f32.mrb[0].mxu0
    %v1409 = vadd.f32 0.0, %v1408
    %v1410 = vpop.f32.mrb[0].mxu0
    %1411 = vdwg.mxu0
    %v1413 = vsel %vm720, %v843, 0
    %v1416 = vsel %vm720, %v844, 0
    %1418 = vmatprep.subr.mxu0 0.0
    %1419 = vmatpush1.msra.mxu0 %v102
    %1420 = vmatprep.subr.mxu0 0.0
    %1421 = vmatpush1.msra.mxu0 %v103
    %1422 = vmatprep.subr.mxu0 0.0
    %1423 = vmatpush1.msra.mxu0 0.0
    %1424 = vmatprep.subr.mxu0 0.0
    %1425 = vmatpush1.msra.mxu0 0.0
    %1426 = vmatprep.subr.mxu0 0.0
    %1427 = vmatpush1.msra.mxu0 0.0
    %1428 = vmatprep.subr.mxu0 0.0
    %1429 = vmatpush1.msra.mxu0 0.0
    %1430 = vmatprep.subr.mxu0 0.0
    %1431 = vmatpush1.msra.mxu0 0.0
    %1432 = vmatprep.subr.mxu0 0.0
    %1433 = vmatpush1.msra.mxu0 0.0
    %1434 = vmatprep.subr.mxu0 0.0
    %1435 = vmatpush1.msra.mxu0 0.0
    %1436 = vmatprep.subr.mxu0 0.0
    %1437 = vmatpush1.msra.mxu0 0.0
    %1438 = vmatprep.subr.mxu0 0.0
    %1439 = vmatpush1.msra.mxu0 0.0
    %1440 = vmatprep.subr.mxu0 0.0
    %1441 = vmatpush1.msra.mxu0 0.0
    %1442 = vmatprep.subr.mxu0 0.0
    %1443 = vmatpush1.msra.mxu0 0.0
    %1444 = vmatprep.subr.mxu0 0.0
    %1445 = vmatpush1.msra.mxu0 0.0
    %1446 = vmatprep.subr.mxu0 0.0
    %1447 = vmatpush1.msra.mxu0 0.0
    %1448 = vmatprep.subr.mxu0 0.0
    %1449 = vmatpush1.msra.mxu0 0.0
    %1450 = vmatprep.subr.mxu0 0.0
    %1451 = vmatpush1.msra.mxu0 0.0
    %1452 = vmatprep.subr.mxu0 0.0
    %1453 = vmatpush1.msra.mxu0 0.0
    %1454 = vmatprep.subr.mxu0 0.0
    %1455 = vmatpush1.msra.mxu0 0.0
    %1456 = vmatprep.subr.mxu0 0.0
    %1457 = vmatpush1.msra.mxu0 0.0
    %1458 = vmatprep.subr.mxu0 0.0
    %1459 = vmatpush1.msra.mxu0 0.0
    %1460 = vmatprep.subr.mxu0 0.0
    %1461 = vmatpush1.msra.mxu0 0.0
    %1462 = vmatprep.subr.mxu0 0.0
    %1463 = vmatpush1.msra.mxu0 0.0
    %1464 = vmatprep.subr.mxu0 0.0
    %1465 = vmatpush1.msra.mxu0 0.0
    %1466 = vmatprep.subr.mxu0 0.0
    %1467 = vmatpush1.msra.mxu0 0.0
    %1468 = vmatprep.subr.mxu0 0.0
    %1469 = vmatpush1.msra.mxu0 0.0
    %1470 = vmatprep.subr.mxu0 0.0
    %1471 = vmatpush1.msra.mxu0 0.0
    %1472 = vmatprep.subr.mxu0 0.0
    %1473 = vmatpush1.msra.mxu0 0.0
    %1474 = vmatprep.subr.mxu0 0.0
    %1475 = vmatpush1.msra.mxu0 0.0
    %1476 = vmatprep.subr.mxu0 0.0
    %1477 = vmatpush1.msra.mxu0 0.0
    %1478 = vmatprep.subr.mxu0 0.0
    %1479 = vmatpush1.msra.mxu0 0.0
    %1480 = vmatprep.subr.mxu0 0.0
    %1481 = vmatpush1.msra.mxu0 0.0
    %1482 = vmatprep.mubr.f32.mxu0 0.0
    %1483 = vmatmul.mubr.f32.gmra.mrb[0].mxu0 %v1413
    %v1484 = vpop.f32.mrb[0].mxu0
    %v1485 = vadd.f32 0.0, %v1484
    %v1486 = vpop.f32.mrb[0].mxu0
    %1487 = vmatprep.mubr.f32.mxu0 0.0
    %1488 = vmatmul.mubr.f32.gmra.mrb[0].mxu0 %v1416
    %v1489 = vpop.f32.mrb[0].mxu0
    %v1490 = vadd.f32 0.0, %v1489
    %v1491 = vpop.f32.mrb[0].mxu0
    %1492 = vdwg.mxu0
    %1493 = vst [vmem:[#allocation8] sm:$0xff] %v918
    %1494 = vst [vmem:[#allocation8 + $0x8] sm:$0xff] %v923
    %1495 = vst [vmem:[#allocation8 + $0x10] sm:$0xff] %v999
    %1496 = vst [vmem:[#allocation8 + $0x18] sm:$0xff] %v1004
    %1497 = vst [vmem:[#allocation8 + $0x20] sm:$0xff] %v1080
    %1498 = vst [vmem:[#allocation8 + $0x28] sm:$0xff] %v1085
    %1499 = vst [vmem:[#allocation8 + $0x30] sm:$0xff] %v1161
    %1500 = vst [vmem:[#allocation8 + $0x38] sm:$0xff] %v1166
    %1501 = vst [vmem:[#allocation8 + $0x40] sm:$0xff] %v1242
    %1502 = vst [vmem:[#allocation8 + $0x48] sm:$0xff] %v1247
    %1503 = vst [vmem:[#allocation8 + $0x50] sm:$0xff] %v1323
    %1504 = vst [vmem:[#allocation8 + $0x58] sm:$0xff] %v1328
    %1505 = vst [vmem:[#allocation8 + $0x60] sm:$0xff] %v1404
    %1506 = vst [vmem:[#allocation8 + $0x68] sm:$0xff] %v1409
    %1507 = vst [vmem:[#allocation8 + $0x70] sm:$0xff] %v1485
    %1508 = vst [vmem:[#allocation8 + $0x78] sm:$0xff] %v1490
    // Predicated region
    $region26: #{tpu_custom_call.1} parent=1 // pred_check
      _
    $region27: #{tpu_custom_call.1} parent=1 // pred_check_branch
      %1510 = sbr.rel (0) target = $region29
    $region28: #{tpu_custom_call.1} parent=1 // pred_region
      %s1512 = ssub.s32 2048, 2048
      %1513 = vsyncadd [#allocation4], %s1512
      %s1514 = sshll.u32 [#allocation8], 4
      %s1515 = int_to_ptr.vmem [resolvable:$true] %s1514
      %1520 = dma.vmem_to_hbm [thread:$0]  %s1515, 2048, %s3, [#allocation4], 128, 128, 8
    $region29: #{tpu_custom_call.1} parent=1 // pred_fallthru
      _
    // Predicated region
    $region30: #{tpu_custom_call.1} parent=1 // pred_check
      _
    $region31: #{tpu_custom_call.1} parent=1 // pred_check_branch
      %1522 = sbr.rel (0) target = $region33
    $region32: #{tpu_custom_call.1} parent=1 // pred_region
      %1523 = dma.done [#allocation4], 2048
    $region33: #{tpu_custom_call.1} parent=1 // pred_fallthru
      _
    %1524 = vsyncpa [#allocation3], 1
    %1525 = vsyncpa [#allocation6], 1
    %1526 = vsyncpa [#allocation4], 1

</llo_original>
